<compile_context>
chip_gen: v6e
topology: v6e:2x2x1
jax: 0.10.0
libtpu: 0.0.40
codegen_flags: <defaults>
</compile_context>

<pallas_src>
import numpy as np
import jax
import jax.numpy as jnp
from jax.experimental import pallas as pl
from jax.experimental.pallas import tpu as pltpu

# ---------------- synthetic "cfg" (small, deterministic) ----------------
IMS_PER_BATCH = 2            # cfg.TRAIN.IMS_PER_BATCH (data batch = 2*IMS_PER_BATCH: left+right)
IN_CH         = 3
SEM_DIM       = 32           # cfg.SEM.DIM == cfg.DISP.DIM
NUM_CLASSES   = 8            # cfg.MODEL.NUM_CLASSES
INPUT_SIZE    = (16, 16)     # cfg.SEM.INPUT_SIZE
DOWNSAMPLE0   = 1            # cfg.SEM.DOWNSAMPLE == [1] -> step=2, deepsup branch disabled
FEAT_HW       = 4            # spatial size of the (stubbed) decoder output
BN_EPS        = 1e-5

C2     = 2 * SEM_DIM                                     # 64
STEP   = 2 ** DOWNSAMPLE0                                # 2
OUT_HW = INPUT_SIZE[0] // STEP                           # 8
P_PRE  = IMS_PER_BATCH * FEAT_HW * FEAT_HW               # 32  pre-upsample pixels per branch
P_OUT  = IMS_PER_BATCH * OUT_HW * OUT_HW                 # 128 post-upsample pixels per branch
K_ENC  = (INPUT_SIZE[0] // FEAT_HW) * (INPUT_SIZE[1] // FEAT_HW) * IN_CH   # 48


# ============================ fused Pallas kernel ============================

def _segdisp_fused_kernel(psem_ref, pdsp_ref, lab_ref, dwin_ref,
                          w1_ref, b1_ref, g_ref, be_ref, w2_ref, b2_ref,
                          encw_ref, encb_ref, wtap_ref, v_ref, ut_ref,
                          logp_ref, preds_ref, disp_ref, sums_ref):
    # ----- semseg branch: folded (encoder 1x1 . conv1x1) -> SyncBN(train stats) -> ReLU -> conv1x1
    h1 = jnp.dot(w1_ref[...], psem_ref[...].astype(jnp.bfloat16),
                 preferred_element_type=jnp.float32) + b1_ref[...]            # (D, P_PRE)
    mean = jnp.mean(h1, axis=1, keepdims=True)                                # BN batch stats
    var = jnp.mean(jnp.square(h1 - mean), axis=1, keepdims=True)
    scale = g_ref[...] * jax.lax.rsqrt(var + BN_EPS)
    shift = be_ref[...] - mean * scale
    h = jnp.maximum(h1 * scale + shift, 0.0)

    logits8 = jnp.dot(w2_ref[...], h.astype(jnp.bfloat16),
                      preferred_element_type=jnp.float32) + b2_ref[...]       # (NC, P_PRE)
    # bilinear 4x4 -> 8x8 upsample as one matmul against precomputed U^T -> lane-dense (NC, P_OUT)
    logits = jnp.dot(logits8, ut_ref[...], preferred_element_type=jnp.float32)

    # log_softmax over classes (sublane axis)
    m = jnp.max(logits, axis=0, keepdims=True)
    e = jnp.exp(logits - m)
    logp = (logits - m) - jnp.log(jnp.sum(e, axis=0, keepdims=True))
    logp_ref[...] = logp

    labels = lab_ref[...]                                                     # (1, P_OUT), 255=ignore
    nc = logits.shape[0]
    cls = jax.lax.broadcasted_iota(jnp.int32, logp.shape, 0)
    picked = jnp.sum(jnp.where(cls == labels, logp, 0.0), axis=0, keepdims=True)   # logp[label]
    is_max = logp == jnp.max(logp, axis=0, keepdims=True)
    preds = jnp.min(jnp.where(is_max, cls, nc), axis=0, keepdims=True)        # first-argmax
    preds_ref[...] = preds
    valid = labels != 255

    # ----- disparity branch: encoder 1x1 -> direct 3x3 conv (Cout=1) -> bilinear upsample -----
    pd = jnp.dot(encw_ref[...], pdsp_ref[...].astype(jnp.bfloat16),
                 preferred_element_type=jnp.float32) + encb_ref[...]          # (C2, P_PRE)
    wtap = wtap_ref[...]                                                      # (C2, 9)
    acc = jnp.zeros((pd.shape[0], logp.shape[1]), jnp.float32)                # (C2, P_OUT)
    for t in range(9):
        # V[t] = (shift+mask of conv tap t) @ (bilinear upsample) on the pixel (lane) axis
        acc = acc + wtap[:, t:t + 1] * jnp.dot(pd, v_ref[t],
                                               preferred_element_type=jnp.float32)
    disp_up = jnp.sum(acc, axis=0, keepdims=True)                             # ONE channel reduction
    disp_ref[...] = disp_up                                                   # lane-dense (1, P_OUT)

    # ----- losses / metrics: adaptive_max_pool2d target, SmoothL1, EPE, NLL, pixel acc -----
    dtarg = jnp.max(dwin_ref[...], axis=0, keepdims=True)                     # 2x2 max-pool windows
    d = disp_up - dtarg
    ad = jnp.abs(d)
    sl1 = jnp.where(ad < 1.0, 0.5 * d * d, ad - 0.5)
    pos = dtarg >= 0.0

    sums_ref[0] = jnp.sum(jnp.where(valid, -picked, 0.0))                     # NLL numerator
    sums_ref[1] = jnp.sum(valid.astype(jnp.float32))                          # valid pixels
    sums_ref[2] = jnp.sum(jnp.where(valid & (preds == labels), 1.0, 0.0))     # correct pixels
    sums_ref[3] = jnp.sum(jnp.where(pos, sl1, 0.0))                           # SmoothL1 numerator
    sums_ref[4] = jnp.sum(jnp.where(pos, ad, 0.0))                            # EPE numerator
    sums_ref[5] = jnp.sum(pos.astype(jnp.float32))                            # positive targets


_VMEM = pl.BlockSpec(memory_space=pltpu.MemorySpace.VMEM)
_SMEM = pl.BlockSpec(memory_space=pltpu.MemorySpace.SMEM)


def segdisp_fused(psem_t, pdsp_t, labels_row, dwin, params):
    return pl.pallas_call(
        _segdisp_fused_kernel,
        out_shape=(jax.ShapeDtypeStruct((NUM_CLASSES, P_OUT), jnp.float32),   # upsampled log-probs
                   jax.ShapeDtypeStruct((1, P_OUT), jnp.int32),               # per-pixel argmax
                   jax.ShapeDtypeStruct((1, P_OUT), jnp.float32),             # upsampled disparity
                   jax.ShapeDtypeStruct((6,), jnp.float32)),                  # scalar reductions
        in_specs=[_VMEM] * 15,
        out_specs=(_VMEM, _VMEM, _VMEM, _SMEM),
    )(psem_t, pdsp_t, labels_row, dwin,
      params['sem_w1f_T'], params['sem_b1f'], params['sem_gamma'], params['sem_beta'],
      params['sem_w2_T'], params['sem_b2'],
      params['enc_w_T'], params['enc_b'],
      params['disp_w_taps'], params['disp_V'], params['upsample_T'])


# ============================ init-time geometry (host-side numpy) ============================

def _bilinear_matrix_np(out_size, in_size):
    # F.interpolate(mode='bilinear', align_corners=False) upsampling as an (out, in) matrix
    m = np.zeros((out_size, in_size), np.float32)
    for i in range(out_size):
        src = (i + 0.5) * in_size / out_size - 0.5
        x0 = int(np.floor(src))
        lam = src - x0
        lo = min(max(x0, 0), in_size - 1)
        hi = min(max(x0 + 1, 0), in_size - 1)
        m[i, lo] += 1.0 - lam
        m[i, hi] += lam
    return m


def _build_geometry():
    b_, f_, o_ = IMS_PER_BATCH, FEAT_HW, OUT_HW
    u_ax = _bilinear_matrix_np(o_, f_)                       # (8, 4)
    u_img = np.kron(u_ax, u_ax)                              # (64, 16) separable bilinear
    u = np.zeros((b_ * o_ * o_, b_ * f_ * f_), np.float32)   # block-diagonal over batch
    for b in range(b_):
        u[b * o_ * o_:(b + 1) * o_ * o_, b * f_ * f_:(b + 1) * f_ * f_] = u_img
    u_t = np.ascontiguousarray(u.T)                          # (P_PRE, P_OUT)

    # per-tap shift+mask selection matrices of the 3x3 'same' conv, folded with the upsample
    v = np.zeros((9, b_ * f_ * f_, b_ * o_ * o_), np.float32)
    for di in range(3):
        for dj in range(3):
            t = di * 3 + dj
            s = np.zeros((b_ * f_ * f_, b_ * f_ * f_), np.float32)
            for b in range(b_):
                for i in range(f_):
                    for j in range(f_):
                        si, sj = i + di - 1, j + dj - 1
                        if 0 <= si < f_ and 0 <= sj < f_:
                            s[b * f_ * f_ + si * f_ + sj, b * f_ * f_ + i * f_ + j] = 1.0
            v[t] = s @ u_t
    return u_t, v


def init_params(key):
    ks = jax.random.split(key, 4)

    def kaiming_uniform(k, fan_in, shape):                   # kaiming_uniform_ (a=0) bound
        bound = jnp.sqrt(6.0 / fan_in)
        return jax.random.uniform(k, shape, jnp.float32, -bound, bound)

    # stub encoder/decoder: 4x4 avg-pool folded into a learned 1x1 projection (K_ENC -> C2)
    enc_w = jax.random.normal(ks[0], (IN_CH, C2), jnp.float32) * 0.1
    encpool_w = jnp.tile(enc_w / 16.0, (FEAT_HW * FEAT_HW, 1))          # (K_ENC, C2)
    enc_b = jnp.zeros((C2,), jnp.float32)

    # conv_last_semseg: Conv2d(C2, D, 1) -> SyncBN(D) -> ReLU -> Conv2d(D, NUM_CLASSES, 1)
    sem_w1 = kaiming_uniform(ks[1], C2, (C2, SEM_DIM))
    sem_b1 = jnp.zeros((SEM_DIM,), jnp.float32)
    sem_w2 = kaiming_uniform(ks[2], SEM_DIM, (SEM_DIM, NUM_CLASSES))
    sem_b2 = jnp.zeros((NUM_CLASSES,), jnp.float32)

    # conv_last_disp: Conv2d(C2, 1, 3, padding=1, bias=False), normal(std=0.01), torch layout
    disp_w = jax.random.normal(ks[3], (1, C2, 3, 3), jnp.float32) * 0.01

    # fold encoder projection into the semseg head's first 1x1 conv (two stacked 1x1 convs)
    w1f = encpool_w @ sem_w1                                  # (K_ENC, D)
    b1f = enc_b @ sem_w1 + sem_b1                             # (D,)

    u_t, v = _build_geometry()

    return {
        'sem_w1f_T': w1f.T.astype(jnp.bfloat16),              # (D, K_ENC)
        'sem_b1f':   b1f.reshape(SEM_DIM, 1),
        'sem_gamma': jnp.ones((SEM_DIM, 1), jnp.float32),
        'sem_beta':  jnp.zeros((SEM_DIM, 1), jnp.float32),
        'sem_w2_T':  sem_w2.T.astype(jnp.bfloat16),           # (NC, D)
        'sem_b2':    sem_b2.reshape(NUM_CLASSES, 1),
        'enc_w_T':   encpool_w.T.astype(jnp.bfloat16),        # (C2, K_ENC)
        'enc_b':     enc_b.reshape(C2, 1),
        'disp_w_taps': disp_w[0].reshape(C2, 9),              # (C2, 9), tap t = di*3 + dj
        'disp_V':    jnp.asarray(v),                          # (9, P_PRE, P_OUT)
        'upsample_T': jnp.asarray(u_t),                       # (P_PRE, P_OUT)
    }


# ============================ model wrapper ============================

def generalized_segdisp_forward(data, semseg_label_0, disp_label_0, params):
    B = IMS_PER_BATCH
    # left/right stereo split (data[:B] / data[B:]) only feeds the disabled CRL branches.

    # ---- stub encoder + decoder input plumbing: 4x4 patches in features-on-sublanes layout ----
    # TODO(synk): the cfg-driven semseg_heads encoder/decoder (ResNet + PPM) are external modules;
    #             stubbed here as a pooled 1x1 projection feeding the real heads.
    x = jnp.transpose(data, (0, 2, 3, 1))                               # NCHW -> NHWC
    n, h, w, c = x.shape
    kh, kw = h // FEAT_HW, w // FEAT_HW
    patches = jnp.transpose(
        x.reshape(n, FEAT_HW, kh, FEAT_HW, kw, c), (0, 1, 3, 2, 4, 5)
    ).reshape(n * FEAT_HW * FEAT_HW, kh * kw * c)
    patches_t = patches.T                                               # (K_ENC, 2B*16)
    psem_t = patches_t[:, :B * FEAT_HW * FEAT_HW]                       # torch.split(pred, B, dim=0)
    pdsp_t = patches_t[:, B * FEAT_HW * FEAT_HW:]

    # ---- labels / disparity target packed into lane-dense slabs for the fused kernel ----
    labels_row = semseg_label_0.reshape(1, P_OUT).astype(jnp.int32)
    dwin = jnp.transpose(
        disp_label_0.reshape(B, OUT_HW, 2, OUT_HW, 2), (2, 4, 0, 1, 3)
    ).reshape(4, P_OUT)                                                 # 2x2 pool windows on sublanes

    logp, preds, disp_row, sums = segdisp_fused(psem_t, pdsp_t, labels_row, dwin, params)

    valid_cnt = sums[1]
    pos_cnt = sums[5]
    loss_semseg = sums[0] / jnp.maximum(valid_cnt, 1.0)   # guarded: all-ignored map won't NaN
    acc = sums[2] / (valid_cnt + 1e-10)
    loss_disp = sums[3] / jnp.maximum(pos_cnt, 1.0)       # reference returns (loss, epe) tuple
    epe = sums[4] / jnp.maximum(pos_cnt, 1.0)

    # ---- visualization / return tensors (output plumbing only) ----
    # TODO(synk): cv2.imwrite('pred_disp_*.png') file I/O side effect omitted.
    pred_disp_out = disp_row.reshape(B, OUT_HW, OUT_HW)
    logp_nchw = jnp.transpose(logp.reshape(NUM_CLASSES, B, OUT_HW, OUT_HW), (1, 0, 2, 3))
    semseg_image = preds.reshape(B, OUT_HW, OUT_HW)[0] * 10
    disp_image = jnp.concatenate([pred_disp_out[0], disp_label_0[0, ::STEP, ::STEP]], axis=1)

    return {
        'losses': {'loss_semseg': loss_semseg[None], 'loss_disp': loss_disp[None]},
        'metrics': {'accuracy_pixel': acc[None], 'EPE': epe[None]},
        'disp_image': disp_image,
        'semseg_image': semseg_image,
        'pred_semseg': logp_nchw,
        'pred_disp': pred_disp_out[:, None],
    }


# ============================ main ============================

if __name__ == "__main__":
    key = jax.random.PRNGKey(0)
    kd, kl, kdl, km, kp = jax.random.split(key, 5)
    params = init_params(kp)

    data = jax.random.normal(kd, (2 * IMS_PER_BATCH, IN_CH, INPUT_SIZE[0], INPUT_SIZE[1]),
                             jnp.float32)

    semseg_label = jax.random.randint(kl, (IMS_PER_BATCH, OUT_HW, OUT_HW), 0,
                                      NUM_CLASSES).astype(jnp.int32)
    semseg_label = jnp.where(jax.random.uniform(km, (IMS_PER_BATCH, OUT_HW, OUT_HW)) < 0.1,
                             255, semseg_label)

    disp_label = jax.random.uniform(kdl, (IMS_PER_BATCH, INPUT_SIZE[0], INPUT_SIZE[1]),
                                    jnp.float32, 0.0, 50.0)
    disp_label = jnp.where(jax.random.uniform(km, disp_label.shape) < 0.2, -1.0, disp_label)

    fwd = jax.jit(generalized_segdisp_forward)
    out = fwd(data, semseg_label, disp_label, params)
    out = jax.block_until_ready(out)

    assert bool(jnp.isfinite(out['losses']['loss_semseg']).all())
    assert bool(jnp.isfinite(out['losses']['loss_disp']).all())
    assert bool(jnp.isfinite(out['metrics']['accuracy_pixel']).all())
    assert bool(jnp.isfinite(out['metrics']['EPE']).all())
    print("KERNEL_OK")
</pallas_src>

<mosaic_0001>
module attributes {stable_mosaic.version = 11 : i64} {
  func.func @_segdisp_fused_kernel(%arg0: memref<48x32xf32, #tpu.memory_space<vmem>>, %arg1: memref<48x32xf32, #tpu.memory_space<vmem>>, %arg2: memref<1x128xi32, #tpu.memory_space<vmem>>, %arg3: memref<4x128xf32, #tpu.memory_space<vmem>>, %arg4: memref<32x48xbf16, #tpu.memory_space<vmem>>, %arg5: memref<32x1xf32, #tpu.memory_space<vmem>>, %arg6: memref<32x1xf32, #tpu.memory_space<vmem>>, %arg7: memref<32x1xf32, #tpu.memory_space<vmem>>, %arg8: memref<8x32xbf16, #tpu.memory_space<vmem>>, %arg9: memref<8x1xf32, #tpu.memory_space<vmem>>, %arg10: memref<64x48xbf16, #tpu.memory_space<vmem>>, %arg11: memref<64x1xf32, #tpu.memory_space<vmem>>, %arg12: memref<64x9xf32, #tpu.memory_space<vmem>>, %arg13: memref<9x32x128xf32, #tpu.memory_space<vmem>>, %arg14: memref<32x128xf32, #tpu.memory_space<vmem>>, %arg15: memref<8x128xf32, #tpu.memory_space<vmem>>, %arg16: memref<1x128xi32, #tpu.memory_space<vmem>>, %arg17: memref<1x128xf32, #tpu.memory_space<vmem>>, %arg18: memref<6xf32, #tpu.memory_space<smem>>) attributes {dimension_semantics = [], scalar_prefetch = 0 : i64, scratch_operands = 0 : i64, tpu.core_type = #tpu.core_type<tc>} {
    %c0 = arith.constant 0 : index
    %c0_0 = arith.constant 0 : index
    %0 = vector.load %arg4[%c0, %c0_0] : memref<32x48xbf16, #tpu.memory_space<vmem>>, vector<32x48xbf16>
    %c0_1 = arith.constant 0 : index
    %c0_2 = arith.constant 0 : index
    %1 = vector.load %arg0[%c0_1, %c0_2] : memref<48x32xf32, #tpu.memory_space<vmem>>, vector<48x32xf32>
    %2 = arith.truncf %1 : vector<48x32xf32> to vector<48x32xbf16>
    %cst = arith.constant dense<0.000000e+00> : vector<32x32xf32>
    %3 = tpu.matmul %0, %2, %cst {dimension_numbers = #tpu.dot_dimension_numbers<[1], [0], [0], [1], [0, 0, 1, 1], [], []>} : vector<32x48xbf16>, vector<48x32xbf16>, vector<32x32xf32> -> vector<32x32xf32>
    %c0_3 = arith.constant 0 : index
    %c0_4 = arith.constant 0 : index
    %4 = vector.load %arg5[%c0_3, %c0_4] : memref<32x1xf32, #tpu.memory_space<vmem>>, vector<32x1xf32>
    %5 = vector.broadcast %4 : vector<32x1xf32> to vector<32x32xf32>
    %6 = arith.addf %3, %5 : vector<32x32xf32>
    %cst_5 = arith.constant dense<0.000000e+00> : vector<32xf32>
    %7 = vector.multi_reduction <add>, %6, %cst_5 [1] : vector<32x32xf32> to vector<32xf32>
    %8 = vector.shape_cast %7 : vector<32xf32> to vector<32x1xf32>
    %cst_6 = arith.constant 3.200000e+01 : f32
    %9 = vector.broadcast %cst_6 : f32 to vector<32x1xf32>
    %10 = arith.divf %8, %9 : vector<32x1xf32>
    %11 = vector.broadcast %10 : vector<32x1xf32> to vector<32x32xf32>
    %12 = arith.subf %6, %11 : vector<32x32xf32>
    %13 = arith.mulf %12, %12 : vector<32x32xf32>
    %cst_7 = arith.constant dense<0.000000e+00> : vector<32xf32>
    %14 = vector.multi_reduction <add>, %13, %cst_7 [1] : vector<32x32xf32> to vector<32xf32>
    %15 = vector.shape_cast %14 : vector<32xf32> to vector<32x1xf32>
    %cst_8 = arith.constant 3.200000e+01 : f32
    %16 = vector.broadcast %cst_8 : f32 to vector<32x1xf32>
    %17 = arith.divf %15, %16 : vector<32x1xf32>
    %c0_9 = arith.constant 0 : index
    %c0_10 = arith.constant 0 : index
    %18 = vector.load %arg6[%c0_9, %c0_10] : memref<32x1xf32, #tpu.memory_space<vmem>>, vector<32x1xf32>
    %cst_11 = arith.constant 9.99999974E-6 : f32
    %19 = vector.broadcast %cst_11 : f32 to vector<32x1xf32>
    %20 = arith.addf %17, %19 : vector<32x1xf32>
    %21 = math.rsqrt %20 : vector<32x1xf32>
    %22 = arith.mulf %18, %21 : vector<32x1xf32>
    %c0_12 = arith.constant 0 : index
    %c0_13 = arith.constant 0 : index
    %23 = vector.load %arg7[%c0_12, %c0_13] : memref<32x1xf32, #tpu.memory_space<vmem>>, vector<32x1xf32>
    %24 = arith.mulf %10, %22 : vector<32x1xf32>
    %25 = arith.subf %23, %24 : vector<32x1xf32>
    %26 = vector.broadcast %22 : vector<32x1xf32> to vector<32x32xf32>
    %27 = arith.mulf %6, %26 : vector<32x32xf32>
    %28 = vector.broadcast %25 : vector<32x1xf32> to vector<32x32xf32>
    %29 = arith.addf %27, %28 : vector<32x32xf32>
    %cst_14 = arith.constant 0.000000e+00 : f32
    %30 = vector.broadcast %cst_14 : f32 to vector<32x32xf32>
    %31 = arith.maximumf %29, %30 : vector<32x32xf32>
    %c0_15 = arith.constant 0 : index
    %c0_16 = arith.constant 0 : index
    %32 = vector.load %arg8[%c0_15, %c0_16] : memref<8x32xbf16, #tpu.memory_space<vmem>>, vector<8x32xbf16>
    %33 = arith.truncf %31 : vector<32x32xf32> to vector<32x32xbf16>
    %cst_17 = arith.constant dense<0.000000e+00> : vector<8x32xf32>
    %34 = tpu.matmul %32, %33, %cst_17 {dimension_numbers = #tpu.dot_dimension_numbers<[1], [0], [0], [1], [0, 0, 1, 1], [], []>} : vector<8x32xbf16>, vector<32x32xbf16>, vector<8x32xf32> -> vector<8x32xf32>
    %c0_18 = arith.constant 0 : index
    %c0_19 = arith.constant 0 : index
    %35 = vector.load %arg9[%c0_18, %c0_19] : memref<8x1xf32, #tpu.memory_space<vmem>>, vector<8x1xf32>
    %36 = vector.broadcast %35 : vector<8x1xf32> to vector<8x32xf32>
    %37 = arith.addf %34, %36 : vector<8x32xf32>
    %c0_20 = arith.constant 0 : index
    %c0_21 = arith.constant 0 : index
    %38 = vector.load %arg14[%c0_20, %c0_21] : memref<32x128xf32, #tpu.memory_space<vmem>>, vector<32x128xf32>
    %cst_22 = arith.constant dense<0.000000e+00> : vector<8x128xf32>
    %39 = tpu.matmul %37, %38, %cst_22 {dimension_numbers = #tpu.dot_dimension_numbers<[1], [0], [0], [1], [0, 0, 1, 1], [], []>} : vector<8x32xf32>, vector<32x128xf32>, vector<8x128xf32> -> vector<8x128xf32>
    %cst_23 = arith.constant dense<0xFF800000> : vector<128xf32>
    %40 = vector.multi_reduction <maximumf>, %39, %cst_23 [0] : vector<8x128xf32> to vector<128xf32>
    %41 = vector.shape_cast %40 : vector<128xf32> to vector<1x128xf32>
    %42 = vector.broadcast %41 : vector<1x128xf32> to vector<8x128xf32>
    %43 = arith.subf %39, %42 : vector<8x128xf32>
    %44 = math.exp %43 : vector<8x128xf32>
    %45 = vector.broadcast %41 : vector<1x128xf32> to vector<8x128xf32>
    %46 = arith.subf %39, %45 : vector<8x128xf32>
    %cst_24 = arith.constant dense<0.000000e+00> : vector<128xf32>
    %47 = vector.multi_reduction <add>, %44, %cst_24 [0] : vector<8x128xf32> to vector<128xf32>
    %48 = vector.shape_cast %47 : vector<128xf32> to vector<1x128xf32>
    %49 = math.log %48 : vector<1x128xf32>
    %50 = vector.broadcast %49 : vector<1x128xf32> to vector<8x128xf32>
    %51 = arith.subf %46, %50 : vector<8x128xf32>
    %c0_25 = arith.constant 0 : index
    %c0_26 = arith.constant 0 : index
    %52 = vector.load %arg15[%c0_25, %c0_26] : memref<8x128xf32, #tpu.memory_space<vmem>>, vector<8x128xf32>
    tpu.vector_store %arg15[%c0_25, %c0_26], %51 {strides = array<i32>} : memref<8x128xf32, #tpu.memory_space<vmem>>, vector<8x128xf32>,
    %c0_27 = arith.constant 0 : index
    %c0_28 = arith.constant 0 : index
    %53 = vector.load %arg2[%c0_27, %c0_28] : memref<1x128xi32, #tpu.memory_space<vmem>>, vector<1x128xi32>
    %54 = tpu.iota {dimensions = array<i32: 0>} : vector<8x128xi32>
    %55 = vector.broadcast %53 : vector<1x128xi32> to vector<8x128xi32>
    %56 = arith.cmpi eq, %54, %55 : vector<8x128xi32>
    %cst_29 = arith.constant 0.000000e+00 : f32
    %57 = vector.broadcast %cst_29 : f32 to vector<8x128xf32>
    %58 = arith.select %56, %51, %57 : vector<8x128xi1>, vector<8x128xf32>
    %cst_30 = arith.constant dense<0.000000e+00> : vector<128xf32>
    %59 = vector.multi_reduction <add>, %58, %cst_30 [0] : vector<8x128xf32> to vector<128xf32>
    %60 = vector.shape_cast %59 : vector<128xf32> to vector<1x128xf32>
    %cst_31 = arith.constant dense<0xFF800000> : vector<128xf32>
    %61 = vector.multi_reduction <maximumf>, %51, %cst_31 [0] : vector<8x128xf32> to vector<128xf32>
    %62 = vector.shape_cast %61 : vector<128xf32> to vector<1x128xf32>
    %63 = vector.broadcast %62 : vector<1x128xf32> to vector<8x128xf32>
    %64 = arith.cmpf oeq, %51, %63 : vector<8x128xf32>
    %c8_i32 = arith.constant 8 : i32
    %65 = vector.broadcast %c8_i32 : i32 to vector<8x128xi32>
    %66 = arith.select %64, %54, %65 : vector<8x128xi1>, vector<8x128xi32>
    %cst_32 = arith.constant dense<2147483647> : vector<128xi32>
    %67 = vector.multi_reduction <minsi>, %66, %cst_32 [0] : vector<8x128xi32> to vector<128xi32>
    %68 = vector.shape_cast %67 : vector<128xi32> to vector<1x128xi32>
    %c0_33 = arith.constant 0 : index
    %c0_34 = arith.constant 0 : index
    %69 = vector.load %arg16[%c0_33, %c0_34] : memref<1x128xi32, #tpu.memory_space<vmem>>, vector<1x128xi32>
    tpu.vector_store %arg16[%c0_33, %c0_34], %68 {strides = array<i32>} : memref<1x128xi32, #tpu.memory_space<vmem>>, vector<1x128xi32>,
    %c255_i32 = arith.constant 255 : i32
    %70 = vector.broadcast %c255_i32 : i32 to vector<1x128xi32>
    %71 = arith.cmpi ne, %53, %70 : vector<1x128xi32>
    %c0_35 = arith.constant 0 : index
    %c0_36 = arith.constant 0 : index
    %72 = vector.load %arg10[%c0_35, %c0_36] : memref<64x48xbf16, #tpu.memory_space<vmem>>, vector<64x48xbf16>
    %c0_37 = arith.constant 0 : index
    %c0_38 = arith.constant 0 : index
    %73 = vector.load %arg1[%c0_37, %c0_38] : memref<48x32xf32, #tpu.memory_space<vmem>>, vector<48x32xf32>
    %74 = arith.truncf %73 : vector<48x32xf32> to vector<48x32xbf16>
    %cst_39 = arith.constant dense<0.000000e+00> : vector<64x32xf32>
    %75 = tpu.matmul %72, %74, %cst_39 {dimension_numbers = #tpu.dot_dimension_numbers<[1], [0], [0], [1], [0, 0, 1, 1], [], []>} : vector<64x48xbf16>, vector<48x32xbf16>, vector<64x32xf32> -> vector<64x32xf32>
    %c0_40 = arith.constant 0 : index
    %c0_41 = arith.constant 0 : index
    %76 = vector.load %arg11[%c0_40, %c0_41] : memref<64x1xf32, #tpu.memory_space<vmem>>, vector<64x1xf32>
    %77 = vector.broadcast %76 : vector<64x1xf32> to vector<64x32xf32>
    %78 = arith.addf %75, %77 : vector<64x32xf32>
    %c0_42 = arith.constant 0 : index
    %c0_43 = arith.constant 0 : index
    %79 = vector.load %arg12[%c0_42, %c0_43] : memref<64x9xf32, #tpu.memory_space<vmem>>, vector<64x9xf32>
    %cst_44 = arith.constant 0.000000e+00 : f32
    %80 = vector.broadcast %cst_44 : f32 to vector<64x128xf32>
    %81 = vector.extract_strided_slice %79 {offsets = [0, 0], sizes = [64, 1], strides = [1, 1]} : vector<64x9xf32> to vector<64x1xf32>
    %c0_45 = arith.constant 0 : index
    %c0_46 = arith.constant 0 : index
    %c0_47 = arith.constant 0 : index
    %82 = vector.load %arg13[%c0_45, %c0_46, %c0_47] : memref<9x32x128xf32, #tpu.memory_space<vmem>>, vector<1x32x128xf32>
    %83 = vector.shape_cast %82 : vector<1x32x128xf32> to vector<32x128xf32>
    %cst_48 = arith.constant dense<0.000000e+00> : vector<64x128xf32>
    %84 = tpu.matmul %78, %83, %cst_48 {dimension_numbers = #tpu.dot_dimension_numbers<[1], [0], [0], [1], [0, 0, 1, 1], [], []>} : vector<64x32xf32>, vector<32x128xf32>, vector<64x128xf32> -> vector<64x128xf32>
    %85 = vector.broadcast %81 : vector<64x1xf32> to vector<64x128xf32>
    %86 = arith.mulf %85, %84 : vector<64x128xf32>
    %87 = arith.addf %80, %86 : vector<64x128xf32>
    %88 = vector.extract_strided_slice %79 {offsets = [0, 1], sizes = [64, 1], strides = [1, 1]} : vector<64x9xf32> to vector<64x1xf32>
    %c1 = arith.constant 1 : index
    %c0_49 = arith.constant 0 : index
    %c0_50 = arith.constant 0 : index
    %89 = vector.load %arg13[%c1, %c0_49, %c0_50] : memref<9x32x128xf32, #tpu.memory_space<vmem>>, vector<1x32x128xf32>
    %90 = vector.shape_cast %89 : vector<1x32x128xf32> to vector<32x128xf32>
    %cst_51 = arith.constant dense<0.000000e+00> : vector<64x128xf32>
    %91 = tpu.matmul %78, %90, %cst_51 {dimension_numbers = #tpu.dot_dimension_numbers<[1], [0], [0], [1], [0, 0, 1, 1], [], []>} : vector<64x32xf32>, vector<32x128xf32>, vector<64x128xf32> -> vector<64x128xf32>
    %92 = vector.broadcast %88 : vector<64x1xf32> to vector<64x128xf32>
    %93 = arith.mulf %92, %91 : vector<64x128xf32>
    %94 = arith.addf %87, %93 : vector<64x128xf32>
    %95 = vector.extract_strided_slice %79 {offsets = [0, 2], sizes = [64, 1], strides = [1, 1]} : vector<64x9xf32> to vector<64x1xf32>
    %c2 = arith.constant 2 : index
    %c0_52 = arith.constant 0 : index
    %c0_53 = arith.constant 0 : index
    %96 = vector.load %arg13[%c2, %c0_52, %c0_53] : memref<9x32x128xf32, #tpu.memory_space<vmem>>, vector<1x32x128xf32>
    %97 = vector.shape_cast %96 : vector<1x32x128xf32> to vector<32x128xf32>
    %cst_54 = arith.constant dense<0.000000e+00> : vector<64x128xf32>
    %98 = tpu.matmul %78, %97, %cst_54 {dimension_numbers = #tpu.dot_dimension_numbers<[1], [0], [0], [1], [0, 0, 1, 1], [], []>} : vector<64x32xf32>, vector<32x128xf32>, vector<64x128xf32> -> vector<64x128xf32>
    %99 = vector.broadcast %95 : vector<64x1xf32> to vector<64x128xf32>
    %100 = arith.mulf %99, %98 : vector<64x128xf32>
    %101 = arith.addf %94, %100 : vector<64x128xf32>
    %102 = vector.extract_strided_slice %79 {offsets = [0, 3], sizes = [64, 1], strides = [1, 1]} : vector<64x9xf32> to vector<64x1xf32>
    %c3 = arith.constant 3 : index
    %c0_55 = arith.constant 0 : index
    %c0_56 = arith.constant 0 : index
    %103 = vector.load %arg13[%c3, %c0_55, %c0_56] : memref<9x32x128xf32, #tpu.memory_space<vmem>>, vector<1x32x128xf32>
    %104 = vector.shape_cast %103 : vector<1x32x128xf32> to vector<32x128xf32>
    %cst_57 = arith.constant dense<0.000000e+00> : vector<64x128xf32>
    %105 = tpu.matmul %78, %104, %cst_57 {dimension_numbers = #tpu.dot_dimension_numbers<[1], [0], [0], [1], [0, 0, 1, 1], [], []>} : vector<64x32xf32>, vector<32x128xf32>, vector<64x128xf32> -> vector<64x128xf32>
    %106 = vector.broadcast %102 : vector<64x1xf32> to vector<64x128xf32>
    %107 = arith.mulf %106, %105 : vector<64x128xf32>
    %108 = arith.addf %101, %107 : vector<64x128xf32>
    %109 = vector.extract_strided_slice %79 {offsets = [0, 4], sizes = [64, 1], strides = [1, 1]} : vector<64x9xf32> to vector<64x1xf32>
    %c4 = arith.constant 4 : index
    %c0_58 = arith.constant 0 : index
    %c0_59 = arith.constant 0 : index
    %110 = vector.load %arg13[%c4, %c0_58, %c0_59] : memref<9x32x128xf32, #tpu.memory_space<vmem>>, vector<1x32x128xf32>
    %111 = vector.shape_cast %110 : vector<1x32x128xf32> to vector<32x128xf32>
    %cst_60 = arith.constant dense<0.000000e+00> : vector<64x128xf32>
    %112 = tpu.matmul %78, %111, %cst_60 {dimension_numbers = #tpu.dot_dimension_numbers<[1], [0], [0], [1], [0, 0, 1, 1], [], []>} : vector<64x32xf32>, vector<32x128xf32>, vector<64x128xf32> -> vector<64x128xf32>
    %113 = vector.broadcast %109 : vector<64x1xf32> to vector<64x128xf32>
    %114 = arith.mulf %113, %112 : vector<64x128xf32>
    %115 = arith.addf %108, %114 : vector<64x128xf32>
    %116 = vector.extract_strided_slice %79 {offsets = [0, 5], sizes = [64, 1], strides = [1, 1]} : vector<64x9xf32> to vector<64x1xf32>
    %c5 = arith.constant 5 : index
    %c0_61 = arith.constant 0 : index
    %c0_62 = arith.constant 0 : index
    %117 = vector.load %arg13[%c5, %c0_61, %c0_62] : memref<9x32x128xf32, #tpu.memory_space<vmem>>, vector<1x32x128xf32>
    %118 = vector.shape_cast %117 : vector<1x32x128xf32> to vector<32x128xf32>
    %cst_63 = arith.constant dense<0.000000e+00> : vector<64x128xf32>
    %119 = tpu.matmul %78, %118, %cst_63 {dimension_numbers = #tpu.dot_dimension_numbers<[1], [0], [0], [1], [0, 0, 1, 1], [], []>} : vector<64x32xf32>, vector<32x128xf32>, vector<64x128xf32> -> vector<64x128xf32>
    %120 = vector.broadcast %116 : vector<64x1xf32> to vector<64x128xf32>
    %121 = arith.mulf %120, %119 : vector<64x128xf32>
    %122 = arith.addf %115, %121 : vector<64x128xf32>
    %123 = vector.extract_strided_slice %79 {offsets = [0, 6], sizes = [64, 1], strides = [1, 1]} : vector<64x9xf32> to vector<64x1xf32>
    %c6 = arith.constant 6 : index
    %c0_64 = arith.constant 0 : index
    %c0_65 = arith.constant 0 : index
    %124 = vector.load %arg13[%c6, %c0_64, %c0_65] : memref<9x32x128xf32, #tpu.memory_space<vmem>>, vector<1x32x128xf32>
    %125 = vector.shape_cast %124 : vector<1x32x128xf32> to vector<32x128xf32>
    %cst_66 = arith.constant dense<0.000000e+00> : vector<64x128xf32>
    %126 = tpu.matmul %78, %125, %cst_66 {dimension_numbers = #tpu.dot_dimension_numbers<[1], [0], [0], [1], [0, 0, 1, 1], [], []>} : vector<64x32xf32>, vector<32x128xf32>, vector<64x128xf32> -> vector<64x128xf32>
    %127 = vector.broadcast %123 : vector<64x1xf32> to vector<64x128xf32>
    %128 = arith.mulf %127, %126 : vector<64x128xf32>
    %129 = arith.addf %122, %128 : vector<64x128xf32>
    %130 = vector.extract_strided_slice %79 {offsets = [0, 7], sizes = [64, 1], strides = [1, 1]} : vector<64x9xf32> to vector<64x1xf32>
    %c7 = arith.constant 7 : index
    %c0_67 = arith.constant 0 : index
    %c0_68 = arith.constant 0 : index
    %131 = vector.load %arg13[%c7, %c0_67, %c0_68] : memref<9x32x128xf32, #tpu.memory_space<vmem>>, vector<1x32x128xf32>
    %132 = vector.shape_cast %131 : vector<1x32x128xf32> to vector<32x128xf32>
    %cst_69 = arith.constant dense<0.000000e+00> : vector<64x128xf32>
    %133 = tpu.matmul %78, %132, %cst_69 {dimension_numbers = #tpu.dot_dimension_numbers<[1], [0], [0], [1], [0, 0, 1, 1], [], []>} : vector<64x32xf32>, vector<32x128xf32>, vector<64x128xf32> -> vector<64x128xf32>
    %134 = vector.broadcast %130 : vector<64x1xf32> to vector<64x128xf32>
    %135 = arith.mulf %134, %133 : vector<64x128xf32>
    %136 = arith.addf %129, %135 : vector<64x128xf32>
    %137 = vector.extract_strided_slice %79 {offsets = [0, 8], sizes = [64, 1], strides = [1, 1]} : vector<64x9xf32> to vector<64x1xf32>
    %c8 = arith.constant 8 : index
    %c0_70 = arith.constant 0 : index
    %c0_71 = arith.constant 0 : index
    %138 = vector.load %arg13[%c8, %c0_70, %c0_71] : memref<9x32x128xf32, #tpu.memory_space<vmem>>, vector<1x32x128xf32>
    %139 = vector.shape_cast %138 : vector<1x32x128xf32> to vector<32x128xf32>
    %cst_72 = arith.constant dense<0.000000e+00> : vector<64x128xf32>
    %140 = tpu.matmul %78, %139, %cst_72 {dimension_numbers = #tpu.dot_dimension_numbers<[1], [0], [0], [1], [0, 0, 1, 1], [], []>} : vector<64x32xf32>, vector<32x128xf32>, vector<64x128xf32> -> vector<64x128xf32>
    %141 = vector.broadcast %137 : vector<64x1xf32> to vector<64x128xf32>
    %142 = arith.mulf %141, %140 : vector<64x128xf32>
    %143 = arith.addf %136, %142 : vector<64x128xf32>
    %cst_73 = arith.constant dense<0.000000e+00> : vector<128xf32>
    %144 = vector.multi_reduction <add>, %143, %cst_73 [0] : vector<64x128xf32> to vector<128xf32>
    %145 = vector.shape_cast %144 : vector<128xf32> to vector<1x128xf32>
    %c0_74 = arith.constant 0 : index
    %c0_75 = arith.constant 0 : index
    %146 = vector.load %arg17[%c0_74, %c0_75] : memref<1x128xf32, #tpu.memory_space<vmem>>, vector<1x128xf32>
    tpu.vector_store %arg17[%c0_74, %c0_75], %145 {strides = array<i32>} : memref<1x128xf32, #tpu.memory_space<vmem>>, vector<1x128xf32>,
    %c0_76 = arith.constant 0 : index
    %c0_77 = arith.constant 0 : index
    %147 = vector.load %arg3[%c0_76, %c0_77] : memref<4x128xf32, #tpu.memory_space<vmem>>, vector<4x128xf32>
    %cst_78 = arith.constant dense<0xFF800000> : vector<128xf32>
    %148 = vector.multi_reduction <maximumf>, %147, %cst_78 [0] : vector<4x128xf32> to vector<128xf32>
    %149 = vector.shape_cast %148 : vector<128xf32> to vector<1x128xf32>
    %150 = arith.subf %145, %149 : vector<1x128xf32>
    %151 = math.absf %150 : vector<1x128xf32>
    %cst_79 = arith.constant 1.000000e+00 : f32
    %152 = vector.broadcast %cst_79 : f32 to vector<1x128xf32>
    %153 = arith.cmpf olt, %151, %152 : vector<1x128xf32>
    %cst_80 = arith.constant 5.000000e-01 : f32
    %154 = vector.broadcast %cst_80 : f32 to vector<1x128xf32>
    %155 = arith.mulf %154, %150 : vector<1x128xf32>
    %156 = arith.mulf %155, %150 : vector<1x128xf32>
    %cst_81 = arith.constant 5.000000e-01 : f32
    %157 = vector.broadcast %cst_81 : f32 to vector<1x128xf32>
    %158 = arith.subf %151, %157 : vector<1x128xf32>
    %159 = arith.select %153, %156, %158 : vector<1x128xi1>, vector<1x128xf32>
    %cst_82 = arith.constant 0.000000e+00 : f32
    %160 = vector.broadcast %cst_82 : f32 to vector<1x128xf32>
    %161 = arith.cmpf oge, %149, %160 : vector<1x128xf32>
    %cst_83 = arith.constant 0.000000e+00 : f32
    %162 = vector.broadcast %cst_83 : f32 to vector<1x128xf32>
    %163 = arith.subf %162, %60 : vector<1x128xf32>
    %cst_84 = arith.constant 0.000000e+00 : f32
    %164 = vector.broadcast %cst_84 : f32 to vector<1x128xf32>
    %165 = arith.select %71, %163, %164 : vector<1x128xi1>, vector<1x128xf32>
    %166 = vector.shape_cast %165 : vector<1x128xf32> to vector<1x1x128xf32>
    %cst_85 = arith.constant dense<0.000000e+00> : vector<1xf32>
    %167 = vector.multi_reduction <add>, %166, %cst_85 [1, 2] : vector<1x1x128xf32> to vector<1xf32>
    %168 = vector.shape_cast %167 : vector<1xf32> to vector<1x1x1xf32>
    %169 = vector.extract %168[0, 0, 0] : f32 from vector<1x1x1xf32>
    %c0_86 = arith.constant 0 : index
    %170 = memref.load %arg18[%c0_86] : memref<6xf32, #tpu.memory_space<smem>>
    memref.store %169, %arg18[%c0_86] : memref<6xf32, #tpu.memory_space<smem>>
    %171 = arith.extui %71 : vector<1x128xi1> to vector<1x128xi32>
    %172 = arith.sitofp %171 : vector<1x128xi32> to vector<1x128xf32>
    %173 = vector.shape_cast %172 : vector<1x128xf32> to vector<1x1x128xf32>
    %cst_87 = arith.constant dense<0.000000e+00> : vector<1xf32>
    %174 = vector.multi_reduction <add>, %173, %cst_87 [1, 2] : vector<1x1x128xf32> to vector<1xf32>
    %175 = vector.shape_cast %174 : vector<1xf32> to vector<1x1x1xf32>
    %176 = vector.extract %175[0, 0, 0] : f32 from vector<1x1x1xf32>
    %c1_88 = arith.constant 1 : index
    %177 = memref.load %arg18[%c1_88] : memref<6xf32, #tpu.memory_space<smem>>
    memref.store %176, %arg18[%c1_88] : memref<6xf32, #tpu.memory_space<smem>>
    %178 = arith.cmpi eq, %68, %53 : vector<1x128xi32>
    %179 = arith.andi %71, %178 : vector<1x128xi1>
    %cst_89 = arith.constant 1.000000e+00 : f32
    %cst_90 = arith.constant 0.000000e+00 : f32
    %180 = vector.broadcast %cst_89 : f32 to vector<1x128xf32>
    %181 = vector.broadcast %cst_90 : f32 to vector<1x128xf32>
    %182 = arith.select %179, %180, %181 : vector<1x128xi1>, vector<1x128xf32>
    %183 = vector.shape_cast %182 : vector<1x128xf32> to vector<1x1x128xf32>
    %cst_91 = arith.constant dense<0.000000e+00> : vector<1xf32>
    %184 = vector.multi_reduction <add>, %183, %cst_91 [1, 2] : vector<1x1x128xf32> to vector<1xf32>
    %185 = vector.shape_cast %184 : vector<1xf32> to vector<1x1x1xf32>
    %186 = vector.extract %185[0, 0, 0] : f32 from vector<1x1x1xf32>
    %c2_92 = arith.constant 2 : index
    %187 = memref.load %arg18[%c2_92] : memref<6xf32, #tpu.memory_space<smem>>
    memref.store %186, %arg18[%c2_92] : memref<6xf32, #tpu.memory_space<smem>>
    %cst_93 = arith.constant 0.000000e+00 : f32
    %188 = vector.broadcast %cst_93 : f32 to vector<1x128xf32>
    %189 = arith.select %161, %159, %188 : vector<1x128xi1>, vector<1x128xf32>
    %190 = vector.shape_cast %189 : vector<1x128xf32> to vector<1x1x128xf32>
    %cst_94 = arith.constant dense<0.000000e+00> : vector<1xf32>
    %191 = vector.multi_reduction <add>, %190, %cst_94 [1, 2] : vector<1x1x128xf32> to vector<1xf32>
    %192 = vector.shape_cast %191 : vector<1xf32> to vector<1x1x1xf32>
    %193 = vector.extract %192[0, 0, 0] : f32 from vector<1x1x1xf32>
    %c3_95 = arith.constant 3 : index
    %194 = memref.load %arg18[%c3_95] : memref<6xf32, #tpu.memory_space<smem>>
    memref.store %193, %arg18[%c3_95] : memref<6xf32, #tpu.memory_space<smem>>
    %cst_96 = arith.constant 0.000000e+00 : f32
    %195 = vector.broadcast %cst_96 : f32 to vector<1x128xf32>
    %196 = arith.select %161, %151, %195 : vector<1x128xi1>, vector<1x128xf32>
    %197 = vector.shape_cast %196 : vector<1x128xf32> to vector<1x1x128xf32>
    %cst_97 = arith.constant dense<0.000000e+00> : vector<1xf32>
    %198 = vector.multi_reduction <add>, %197, %cst_97 [1, 2] : vector<1x1x128xf32> to vector<1xf32>
    %199 = vector.shape_cast %198 : vector<1xf32> to vector<1x1x1xf32>
    %200 = vector.extract %199[0, 0, 0] : f32 from vector<1x1x1xf32>
    %c4_98 = arith.constant 4 : index
    %201 = memref.load %arg18[%c4_98] : memref<6xf32, #tpu.memory_space<smem>>
    memref.store %200, %arg18[%c4_98] : memref<6xf32, #tpu.memory_space<smem>>
    %202 = arith.extui %161 : vector<1x128xi1> to vector<1x128xi32>
    %203 = arith.sitofp %202 : vector<1x128xi32> to vector<1x128xf32>
    %204 = vector.shape_cast %203 : vector<1x128xf32> to vector<1x1x128xf32>
    %cst_99 = arith.constant dense<0.000000e+00> : vector<1xf32>
    %205 = vector.multi_reduction <add>, %204, %cst_99 [1, 2] : vector<1x1x128xf32> to vector<1xf32>
    %206 = vector.shape_cast %205 : vector<1xf32> to vector<1x1x1xf32>
    %207 = vector.extract %206[0, 0, 0] : f32 from vector<1x1x1xf32>
    %c5_100 = arith.constant 5 : index
    %208 = memref.load %arg18[%c5_100] : memref<6xf32, #tpu.memory_space<smem>>
    memref.store %207, %arg18[%c5_100] : memref<6xf32, #tpu.memory_space<smem>>
    return
  }
}

</mosaic_0001>

<llo_original>
// kernel: squeeze.16
$region0: #{squeeze.16}
  %s0 = inlined_call_operand.vmem [shape: f32[64], index: 0, kind: input, shape index: {}]
  %s1 = inlined_call_operand.vmem [shape: f32[8,8], index: 1, kind: output, shape index: {}]
  $region1: #{squeeze.16} parent=0
    #allocation0 [shape = 'u8[4096]{0}', space=vmem, size = 0x1000, scoped, tag = 'scoped mem for input reshape']
    %s3 = sshll.u32 1, 1
    %s4 = ssub.s32 %s3, 1
    %v5 = vld [vmem:[%s0] sm:%s4]
    %6 = vst [vmem:[#allocation0] sm:%s4] %v5
    %v7 = vld [vmem:[#allocation0] sm:$0x1]
    %vm8 = vcmask 64512
    %9 = vst.msk [vmem:[%s1] sm:$0x1] %vm8, %v7
    %v10 = vld [vmem:[#allocation0] sm:$0x1]
    %11 = vrot.lane.b32.xlu0 %v10, 120
    %v12 = vpop.permute.xlu0 %11
    %vm13 = vcmask 64512
    %s14 = scalar_lea.vmem %s1, 1
    %15 = vst.msk [vmem:[%s14] sm:$0x1] %vm13, %v12
    %v16 = vld [vmem:[#allocation0] sm:$0x1]
    %17 = vrot.lane.b32.xlu0 %v16, 112
    %v18 = vpop.permute.xlu0 %17
    %vm19 = vcmask 64512
    %s20 = scalar_lea.vmem %s1, 2
    %21 = vst.msk [vmem:[%s20] sm:$0x1] %vm19, %v18
    %v22 = vld [vmem:[#allocation0] sm:$0x1]
    %23 = vrot.lane.b32.xlu0 %v22, 104
    %v24 = vpop.permute.xlu0 %23
    %vm25 = vcmask 64512
    %s26 = scalar_lea.vmem %s1, 3
    %27 = vst.msk [vmem:[%s26] sm:$0x1] %vm25, %v24
    %v28 = vld [vmem:[#allocation0] sm:$0x1]
    %29 = vrot.lane.b32.xlu0 %v28, 96
    %v30 = vpop.permute.xlu0 %29
    %vm31 = vcmask 64512
    %s32 = scalar_lea.vmem %s1, 4
    %33 = vst.msk [vmem:[%s32] sm:$0x1] %vm31, %v30
    %v34 = vld [vmem:[#allocation0] sm:$0x1]
    %35 = vrot.lane.b32.xlu0 %v34, 88
    %v36 = vpop.permute.xlu0 %35
    %vm37 = vcmask 64512
    %s38 = scalar_lea.vmem %s1, 5
    %39 = vst.msk [vmem:[%s38] sm:$0x1] %vm37, %v36
    %v40 = vld [vmem:[#allocation0] sm:$0x1]
    %41 = vrot.lane.b32.xlu0 %v40, 80
    %v42 = vpop.permute.xlu0 %41
    %vm43 = vcmask 64512
    %s44 = scalar_lea.vmem %s1, 6
    %45 = vst.msk [vmem:[%s44] sm:$0x1] %vm43, %v42
    %v46 = vld [vmem:[#allocation0] sm:$0x1]
    %47 = vrot.lane.b32.xlu0 %v46, 72
    %v48 = vpop.permute.xlu0 %47
    %vm49 = vcmask 64512
    %s50 = scalar_lea.vmem %s1, 7
    %51 = vst.msk [vmem:[%s50] sm:$0x1] %vm49, %v48

// kernel: generalized_segdisp_forward.1
$region0: #{generalized_segdisp_forward.1}
  #allocation0 [shape = 'u32[]', space=smem, size = 0x4, offset = 0x4, fixed_abs, tag = 'smem constant byte address 0x4 - core index']
  #allocation1 [shape = 'u32[144,128]{1,0:T(1,128)}', space=vmem, size = 0x12000, scoped, tag = 'internal scratch']
  %s0 = inlined_call_operand.vmem [shape: f32[48,32], index: 0, kind: input, shape index: {}]
  %s1 = inlined_call_operand.vmem [shape: f32[48,32], index: 1, kind: input, shape index: {}]
  %s2 = inlined_call_operand.vmem [shape: s32[1,128], index: 2, kind: input, shape index: {}]
  %s3 = inlined_call_operand.vmem [shape: f32[4,128], index: 3, kind: input, shape index: {}]
  %s4 = inlined_call_operand.vmem [shape: bf16[32,48], index: 4, kind: input, shape index: {}]
  %s5 = inlined_call_operand.vmem [shape: f32[32,1], index: 5, kind: input, shape index: {}]
  %s6 = inlined_call_operand.vmem [shape: f32[32,1], index: 6, kind: input, shape index: {}]
  %s7 = inlined_call_operand.vmem [shape: f32[32,1], index: 7, kind: input, shape index: {}]
  %s8 = inlined_call_operand.vmem [shape: bf16[8,32], index: 8, kind: input, shape index: {}]
  %s9 = inlined_call_operand.vmem [shape: f32[8,1], index: 9, kind: input, shape index: {}]
  %s10 = inlined_call_operand.vmem [shape: bf16[64,48], index: 10, kind: input, shape index: {}]
  %s11 = inlined_call_operand.vmem [shape: f32[64,1], index: 11, kind: input, shape index: {}]
  %s12 = inlined_call_operand.vmem [shape: f32[64,9], index: 12, kind: input, shape index: {}]
  %s13 = inlined_call_operand.vmem [shape: f32[9,32,128], index: 13, kind: input, shape index: {}]
  %s14 = inlined_call_operand.vmem [shape: f32[32,128], index: 14, kind: input, shape index: {}]
  %s15 = inlined_call_operand.vmem [shape: f32[8,128], index: 15, kind: output, shape index: {0}]
  %s16 = inlined_call_operand.vmem [shape: s32[1,128], index: 16, kind: output, shape index: {1}]
  %s17 = inlined_call_operand.vmem [shape: f32[1,128], index: 17, kind: output, shape index: {2}]
  %s18 = inlined_call_operand.vmem [shape: f32[6], index: 18, kind: output, shape index: {3}]
  %19 = xla_tuple %s15, %s16, %s17, %s18
  %s20 = sld [smem:[#allocation0]]
  $region94: #{generalized_segdisp_forward.1} parent=0
    _
  %s22 = ssub.s32 1, %s20
  %s23 = scalar_select 0, %s22, %s20
  $region1: #{generalized_segdisp_forward.1} parent=0
    #allocation2 [shape = 'u8[512]{0}', space=smem, size = 0x200, scoped, tag = 'output window, operand 3, single buffered']
    #allocation3 [shape = 's32[1]{0}', space=sflag, size = 0x4, scoped, tag = 'scoped memory for generalized_segdisp_forward.1']
    %24 = vsyncpa [#allocation3], 0
    // Predicated region
    $region2: #{generalized_segdisp_forward.1} parent=1 // pred_check
      _
    $region3: #{generalized_segdisp_forward.1} parent=1 // pred_check_branch
      %26 = sbr.rel (0) target = $region5
    $region4: #{generalized_segdisp_forward.1} parent=1 // pred_region
      _
    $region5: #{generalized_segdisp_forward.1} parent=1 // pred_fallthru
      _
    // Predicated region
    $region6: #{generalized_segdisp_forward.1} parent=1 // pred_check
      _
    $region7: #{generalized_segdisp_forward.1} parent=1 // pred_check_branch
      %28 = sbr.rel (0) target = $region9
    $region8: #{generalized_segdisp_forward.1} parent=1 // pred_region
      _
    $region9: #{generalized_segdisp_forward.1} parent=1 // pred_fallthru
      _
    // Predicated region
    $region10: #{generalized_segdisp_forward.1} parent=1 // pred_check
      _
    $region11: #{generalized_segdisp_forward.1} parent=1 // pred_check_branch
      %30 = sbr.rel (0) target = $region13
    $region12: #{generalized_segdisp_forward.1} parent=1 // pred_region
      _
    $region13: #{generalized_segdisp_forward.1} parent=1 // pred_fallthru
      _
    // Predicated region
    $region14: #{generalized_segdisp_forward.1} parent=1 // pred_check
      _
    $region15: #{generalized_segdisp_forward.1} parent=1 // pred_check_branch
      %32 = sbr.rel (0) target = $region17
    $region16: #{generalized_segdisp_forward.1} parent=1 // pred_region
      _
    $region17: #{generalized_segdisp_forward.1} parent=1 // pred_fallthru
      _
    // Predicated region
    $region18: #{generalized_segdisp_forward.1} parent=1 // pred_check
      _
    $region19: #{generalized_segdisp_forward.1} parent=1 // pred_check_branch
      %34 = sbr.rel (0) target = $region21
    $region20: #{generalized_segdisp_forward.1} parent=1 // pred_region
      _
    $region21: #{generalized_segdisp_forward.1} parent=1 // pred_fallthru
      _
    // Predicated region
    $region22: #{generalized_segdisp_forward.1} parent=1 // pred_check
      _
    $region23: #{generalized_segdisp_forward.1} parent=1 // pred_check_branch
      %36 = sbr.rel (0) target = $region25
    $region24: #{generalized_segdisp_forward.1} parent=1 // pred_region
      _
    $region25: #{generalized_segdisp_forward.1} parent=1 // pred_fallthru
      _
    // Predicated region
    $region26: #{generalized_segdisp_forward.1} parent=1 // pred_check
      _
    $region27: #{generalized_segdisp_forward.1} parent=1 // pred_check_branch
      %38 = sbr.rel (0) target = $region29
    $region28: #{generalized_segdisp_forward.1} parent=1 // pred_region
      _
    $region29: #{generalized_segdisp_forward.1} parent=1 // pred_fallthru
      _
    // Predicated region
    $region30: #{generalized_segdisp_forward.1} parent=1 // pred_check
      _
    $region31: #{generalized_segdisp_forward.1} parent=1 // pred_check_branch
      %40 = sbr.rel (0) target = $region33
    $region32: #{generalized_segdisp_forward.1} parent=1 // pred_region
      _
    $region33: #{generalized_segdisp_forward.1} parent=1 // pred_fallthru
      _
    // Predicated region
    $region34: #{generalized_segdisp_forward.1} parent=1 // pred_check
      _
    $region35: #{generalized_segdisp_forward.1} parent=1 // pred_check_branch
      %42 = sbr.rel (0) target = $region37
    $region36: #{generalized_segdisp_forward.1} parent=1 // pred_region
      _
    $region37: #{generalized_segdisp_forward.1} parent=1 // pred_fallthru
      _
    // Predicated region
    $region38: #{generalized_segdisp_forward.1} parent=1 // pred_check
      _
    $region39: #{generalized_segdisp_forward.1} parent=1 // pred_check_branch
      %44 = sbr.rel (0) target = $region41
    $region40: #{generalized_segdisp_forward.1} parent=1 // pred_region
      _
    $region41: #{generalized_segdisp_forward.1} parent=1 // pred_fallthru
      _
    // Predicated region
    $region42: #{generalized_segdisp_forward.1} parent=1 // pred_check
      _
    $region43: #{generalized_segdisp_forward.1} parent=1 // pred_check_branch
      %46 = sbr.rel (0) target = $region45
    $region44: #{generalized_segdisp_forward.1} parent=1 // pred_region
      _
    $region45: #{generalized_segdisp_forward.1} parent=1 // pred_fallthru
      _
    // Predicated region
    $region46: #{generalized_segdisp_forward.1} parent=1 // pred_check
      _
    $region47: #{generalized_segdisp_forward.1} parent=1 // pred_check_branch
      %48 = sbr.rel (0) target = $region49
    $region48: #{generalized_segdisp_forward.1} parent=1 // pred_region
      _
    $region49: #{generalized_segdisp_forward.1} parent=1 // pred_fallthru
      _
    // Predicated region
    $region50: #{generalized_segdisp_forward.1} parent=1 // pred_check
      _
    $region51: #{generalized_segdisp_forward.1} parent=1 // pred_check_branch
      %50 = sbr.rel (0) target = $region53
    $region52: #{generalized_segdisp_forward.1} parent=1 // pred_region
      _
    $region53: #{generalized_segdisp_forward.1} parent=1 // pred_fallthru
      _
    // Predicated region
    $region54: #{generalized_segdisp_forward.1} parent=1 // pred_check
      _
    $region55: #{generalized_segdisp_forward.1} parent=1 // pred_check_branch
      %52 = sbr.rel (0) target = $region57
    $region56: #{generalized_segdisp_forward.1} parent=1 // pred_region
      _
    $region57: #{generalized_segdisp_forward.1} parent=1 // pred_fallthru
      _
    // Predicated region
    $region58: #{generalized_segdisp_forward.1} parent=1 // pred_check
      _
    $region59: #{generalized_segdisp_forward.1} parent=1 // pred_check_branch
      %54 = sbr.rel (0) target = $region61
    $region60: #{generalized_segdisp_forward.1} parent=1 // pred_region
      _
    $region61: #{generalized_segdisp_forward.1} parent=1 // pred_fallthru
      _
    %v56 = vld [vmem:[%s4] sm:$0xf]
    %v57 = vld [vmem:[%s4 + $0x4] sm:$0xf]
    %v58 = vld [vmem:[%s4 + $0x8] sm:$0xf]
    %v59 = vld [vmem:[%s4 + $0xc] sm:$0xf]
    %v60 = vld [vmem:[%s0] sm:$0xff]
    %v61 = vld [vmem:[%s0 + $0x8] sm:$0xff]
    %v62 = vld [vmem:[%s0 + $0x10] sm:$0xff]
    %v63 = vld [vmem:[%s0 + $0x18] sm:$0xff]
    %v64 = vld [vmem:[%s0 + $0x20] sm:$0xff]
    %v65 = vld [vmem:[%s0 + $0x28] sm:$0xff]
    %v66 = vpack.c.bf16 %v61, %v60
    %v67 = vpack.c.bf16 %v63, %v62
    %v68 = vpack.c.bf16 %v65, %v64
    %v69 = vld [vmem:[%s5] sm:$0xff]
    %v70 = vld [vmem:[%s5 + $0x8] sm:$0xff]
    %v71 = vld [vmem:[%s5 + $0x10] sm:$0xff]
    %v72 = vld [vmem:[%s5 + $0x18] sm:$0xff]
    %74 = vset.pattern.permute.xlu0 0
    %75 = vperm.xlu0 %74, %v69
    %v76 = vpop.permute.xlu0 %75
    %79 = vset.pattern.permute.xlu0 0
    %80 = vperm.xlu0 %79, %v70
    %v81 = vpop.permute.xlu0 %80
    %84 = vset.pattern.permute.xlu0 0
    %85 = vperm.xlu0 %84, %v71
    %v86 = vpop.permute.xlu0 %85
    %89 = vset.pattern.permute.xlu0 0
    %90 = vperm.xlu0 %89, %v72
    %v91 = vpop.permute.xlu0 %90
    %v97 = vunpack.c.l.b16 %v56
    %v98 = vunpack.c.l.b16 %v57
    %v99 = vunpack.c.l.b16 %v58
    %v100 = vunpack.c.l.b16 %v59
    %v101 = vpack.c.b16 %v98, %v97
    %v102 = vpack.c.b16 %v100, %v99
    %vm103 = vcmask 392192
    %v105 = vsel %vm103, %v101, 0
    %v108 = vsel %vm103, %v102, 0
    %110 = vmatprep.subr.bf16.mxu0 0
    %111 = vmatpush1.bf16.msra.mxu0 0
    %112 = vmatprep.subr.bf16.mxu0 0
    %113 = vmatpush1.bf16.msra.mxu0 0
    %114 = vmatprep.subr.bf16.mxu0 0
    %115 = vmatpush1.bf16.msra.mxu0 0
    %116 = vmatprep.subr.bf16.mxu0 0
    %117 = vmatpush1.bf16.msra.mxu0 0
    %118 = vmatprep.subr.bf16.mxu0 0
    %119 = vmatpush1.bf16.msra.mxu0 0
    %120 = vmatprep.subr.bf16.mxu0 0
    %121 = vmatpush1.bf16.msra.mxu0 %v68
    %122 = vmatprep.subr.bf16.mxu0 0
    %123 = vmatpush1.bf16.msra.mxu0 %v67
    %124 = vmatprep.subr.bf16.mxu0 0
    %125 = vmatpush1.bf16.msra.mxu0 %v66
    %126 = vmatprep.subr.bf16.mxu0 0
    %127 = vmatpush2.bf16.msra.mxu0 0
    %128 = vmatprep.subr.bf16.mxu0 0
    %129 = vmatpush2.bf16.msra.mxu0 0
    %130 = vmatprep.subr.bf16.mxu0 0
    %131 = vmatpush2.bf16.msra.mxu0 0
    %132 = vmatprep.subr.bf16.mxu0 0
    %133 = vmatpush2.bf16.msra.mxu0 0
    %134 = vmatprep.subr.bf16.mxu0 0
    %135 = vmatpush2.bf16.msra.mxu0 0
    %136 = vmatprep.subr.bf16.mxu0 0
    %137 = vmatpush2.bf16.msra.mxu0 0
    %138 = vmatprep.subr.bf16.mxu0 0
    %139 = vmatpush2.bf16.msra.mxu0 0
    %140 = vmatprep.subr.bf16.mxu0 0
    %141 = vmatpush2.bf16.msra.mxu0 0
    %142 = vmatprep.mubr.bf16.mxu0 0
    %143 = vmatmul.mubr.bf16.gmra.mxu0 %v105
    %v144 = vpop.f32.mrf.mxu0
    %v145 = vadd.f32 %v76, %v144
    %v146 = vpop.f32.mrf.mxu0
    %v147 = vpop.f32.mrf.mxu0
    %v148 = vadd.f32 %v81, %v147
    %v149 = vpop.f32.mrf.mxu0
    %150 = vmatprep.mubr.bf16.mxu0 0
    %151 = vmatmul.mubr.bf16.gmra.mxu0 %v108
    %v152 = vpop.f32.mrf.mxu0
    %v153 = vadd.f32 %v86, %v152
    %v154 = vpop.f32.mrf.mxu0
    %v155 = vpop.f32.mrf.mxu0
    %v156 = vadd.f32 %v91, %v155
    %v157 = vpop.f32.mrf.mxu0
    %158 = vdwg.mxu0
    %vm159 = vcmask 261120
    %v160 = vsel %vm159, %v145, 0.0
    %161 = vadd.xlane.f32.xlu0 %v160
    %v162 = vpop.xlane.xlu0 %161
    %v163 = vsel %vm159, %v148, 0.0
    %164 = vadd.xlane.f32.xlu0 %v163
    %v165 = vpop.xlane.xlu0 %164
    %v166 = vsel %vm159, %v153, 0.0
    %167 = vadd.xlane.f32.xlu0 %v166
    %v168 = vpop.xlane.xlu0 %167
    %v169 = vsel %vm159, %v156, 0.0
    %170 = vadd.xlane.f32.xlu0 %v169
    %v171 = vpop.xlane.xlu0 %170
    %v172 = vrcp.pop 32.0
    %v173 = vmul.f32 %v162, %v172
    %v174 = vmul.f32 %v165, %v172
    %v175 = vmul.f32 %v168, %v172
    %v176 = vmul.f32 %v171, %v172
    %v177 = vsub.f32 %v145, %v173
    %v178 = vsub.f32 %v148, %v174
    %v179 = vsub.f32 %v153, %v175
    %v180 = vsub.f32 %v156, %v176
    %v181 = vmul.f32 %v177, %v177
    %v182 = vmul.f32 %v178, %v178
    %v183 = vmul.f32 %v179, %v179
    %v184 = vmul.f32 %v180, %v180
    %v185 = vsel %vm159, %v181, 0.0
    %186 = vadd.xlane.f32.xlu0 %v185
    %v187 = vpop.xlane.xlu0 %186
    %v188 = vsel %vm159, %v182, 0.0
    %189 = vadd.xlane.f32.xlu0 %v188
    %v190 = vpop.xlane.xlu0 %189
    %v191 = vsel %vm159, %v183, 0.0
    %192 = vadd.xlane.f32.xlu0 %v191
    %v193 = vpop.xlane.xlu0 %192
    %v194 = vsel %vm159, %v184, 0.0
    %195 = vadd.xlane.f32.xlu0 %v194
    %v196 = vpop.xlane.xlu0 %195
    %v197 = vmul.f32 %v187, %v172
    %v198 = vmul.f32 %v190, %v172
    %v199 = vmul.f32 %v193, %v172
    %v200 = vmul.f32 %v196, %v172
    %v201 = vld [vmem:[%s6] sm:$0xff]
    %v202 = vld [vmem:[%s6 + $0x8] sm:$0xff]
    %v203 = vld [vmem:[%s6 + $0x10] sm:$0xff]
    %v204 = vld [vmem:[%s6 + $0x18] sm:$0xff]
    %v205 = vadd.f32 %v197, 1e-05
    %v206 = vadd.f32 %v198, 1e-05
    %v207 = vadd.f32 %v199, 1e-05
    %v208 = vadd.f32 %v200, 1e-05
    %v209 = vrsqrt.pop %v205
    %v210 = vrsqrt.pop %v206
    %v211 = vrsqrt.pop %v207
    %v212 = vrsqrt.pop %v208
    %v213 = vmul.f32 %v201, %v209
    %v214 = vmul.f32 %v202, %v210
    %v215 = vmul.f32 %v203, %v211
    %v216 = vmul.f32 %v204, %v212
    %v217 = vld [vmem:[%s7] sm:$0xff]
    %v218 = vld [vmem:[%s7 + $0x8] sm:$0xff]
    %v219 = vld [vmem:[%s7 + $0x10] sm:$0xff]
    %v220 = vld [vmem:[%s7 + $0x18] sm:$0xff]
    %v221 = vmul.f32 %v173, %v213
    %v222 = vmul.f32 %v174, %v214
    %v223 = vmul.f32 %v175, %v215
    %v224 = vmul.f32 %v176, %v216
    %v225 = vsub.f32 %v217, %v221
    %v226 = vsub.f32 %v218, %v222
    %v227 = vsub.f32 %v219, %v223
    %v228 = vsub.f32 %v220, %v224
    %230 = vset.pattern.permute.xlu0 0
    %231 = vperm.xlu0 %230, %v213
    %v232 = vpop.permute.xlu0 %231
    %235 = vset.pattern.permute.xlu0 0
    %236 = vperm.xlu0 %235, %v214
    %v237 = vpop.permute.xlu0 %236
    %240 = vset.pattern.permute.xlu0 0
    %241 = vperm.xlu0 %240, %v215
    %v242 = vpop.permute.xlu0 %241
    %245 = vset.pattern.permute.xlu0 0
    %246 = vperm.xlu0 %245, %v216
    %v247 = vpop.permute.xlu0 %246
    %v249 = vmul.f32 %v145, %v232
    %v250 = vmul.f32 %v148, %v237
    %v251 = vmul.f32 %v153, %v242
    %v252 = vmul.f32 %v156, %v247
    %254 = vset.pattern.permute.xlu0 0
    %255 = vperm.xlu0 %254, %v225
    %v256 = vpop.permute.xlu0 %255
    %259 = vset.pattern.permute.xlu0 0
    %260 = vperm.xlu0 %259, %v226
    %v261 = vpop.permute.xlu0 %260
    %264 = vset.pattern.permute.xlu0 0
    %265 = vperm.xlu0 %264, %v227
    %v266 = vpop.permute.xlu0 %265
    %269 = vset.pattern.permute.xlu0 0
    %270 = vperm.xlu0 %269, %v228
    %v271 = vpop.permute.xlu0 %270
    %v273 = vadd.f32 %v249, %v256
    %v274 = vadd.f32 %v250, %v261
    %v275 = vadd.f32 %v251, %v266
    %v276 = vadd.f32 %v252, %v271
    %v277 = vmax.f32 %v273, 0.0
    %v278 = vmax.f32 %v274, 0.0
    %v279 = vmax.f32 %v275, 0.0
    %v280 = vmax.f32 %v276, 0.0
    %v281 = vld [vmem:[%s8] sm:$0xf]
    %v282 = vpack.c.bf16 %v278, %v277
    %v283 = vpack.c.bf16 %v280, %v279
    %v284 = vld [vmem:[%s9] sm:$0xff]
    %286 = vset.pattern.permute.xlu0 0
    %287 = vperm.xlu0 %286, %v284
    %v288 = vpop.permute.xlu0 %287
    %v291 = vsel %vm159, %v281, 0
    %293 = vmatprep.subr.bf16.mxu0 0
    %294 = vmatpush1.bf16.msra.mxu0 0
    %295 = vmatprep.subr.bf16.mxu0 0
    %296 = vmatpush1.bf16.msra.mxu0 0
    %297 = vmatprep.subr.bf16.mxu0 0
    %298 = vmatpush1.bf16.msra.mxu0 0
    %299 = vmatprep.subr.bf16.mxu0 0
    %300 = vmatpush1.bf16.msra.mxu0 0
    %301 = vmatprep.subr.bf16.mxu0 0
    %302 = vmatpush1.bf16.msra.mxu0 0
    %303 = vmatprep.subr.bf16.mxu0 0
    %304 = vmatpush1.bf16.msra.mxu0 0
    %305 = vmatprep.subr.bf16.mxu0 0
    %306 = vmatpush1.bf16.msra.mxu0 %v283
    %307 = vmatprep.subr.bf16.mxu0 0
    %308 = vmatpush1.bf16.msra.mxu0 %v282
    %309 = vmatprep.subr.bf16.mxu0 0
    %310 = vmatpush2.bf16.msra.mxu0 0
    %311 = vmatprep.subr.bf16.mxu0 0
    %312 = vmatpush2.bf16.msra.mxu0 0
    %313 = vmatprep.subr.bf16.mxu0 0
    %314 = vmatpush2.bf16.msra.mxu0 0
    %315 = vmatprep.subr.bf16.mxu0 0
    %316 = vmatpush2.bf16.msra.mxu0 0
    %317 = vmatprep.subr.bf16.mxu0 0
    %318 = vmatpush2.bf16.msra.mxu0 0
    %319 = vmatprep.subr.bf16.mxu0 0
    %320 = vmatpush2.bf16.msra.mxu0 0
    %321 = vmatprep.subr.bf16.mxu0 0
    %322 = vmatpush2.bf16.msra.mxu0 0
    %323 = vmatprep.subr.bf16.mxu0 0
    %324 = vmatpush2.bf16.msra.mxu0 0
    %325 = vmatprep.mubr.bf16.mxu0 0
    %326 = vmatmul.mubr.bf16.gmra.mxu0 %v291
    %v327 = vpop.f32.mrf.mxu0
    %v328 = vadd.f32 %v288, %v327
    %v329 = vpop.f32.mrf.mxu0
    %v330 = vpop.f32.mrf.mxu0
    %v331 = vpop.f32.mrf.mxu0
    %332 = vdwg.mxu0
    %v333 = vld [vmem:[%s14] sm:$0xff]
    %v334 = vld [vmem:[%s14 + $0x8] sm:$0xff]
    %v335 = vld [vmem:[%s14 + $0x10] sm:$0xff]
    %v336 = vld [vmem:[%s14 + $0x18] sm:$0xff]
    %v338 = vsel %vm159, %v328, 0
    %340 = vmatprep.subr.mxu0 0.0
    %341 = vmatpush1.msra.mxu0 0.0
    %342 = vmatprep.subr.mxu0 0.0
    %343 = vmatpush1.msra.mxu0 0.0
    %344 = vmatprep.subr.mxu0 0.0
    %345 = vmatpush1.msra.mxu0 0.0
    %346 = vmatprep.subr.mxu0 0.0
    %347 = vmatpush1.msra.mxu0 0.0
    %348 = vmatprep.subr.mxu0 0.0
    %349 = vmatpush1.msra.mxu0 0.0
    %350 = vmatprep.subr.mxu0 0.0
    %351 = vmatpush1.msra.mxu0 0.0
    %352 = vmatprep.subr.mxu0 0.0
    %353 = vmatpush1.msra.mxu0 0.0
    %354 = vmatprep.subr.mxu0 0.0
    %355 = vmatpush1.msra.mxu0 0.0
    %356 = vmatprep.subr.mxu0 0.0
    %357 = vmatpush1.msra.mxu0 0.0
    %358 = vmatprep.subr.mxu0 0.0
    %359 = vmatpush1.msra.mxu0 0.0
    %360 = vmatprep.subr.mxu0 0.0
    %361 = vmatpush1.msra.mxu0 0.0
    %362 = vmatprep.subr.mxu0 0.0
    %363 = vmatpush1.msra.mxu0 0.0
    %364 = vmatprep.subr.mxu0 0.0
    %365 = vmatpush1.msra.mxu0 %v336
    %366 = vmatprep.subr.mxu0 0.0
    %367 = vmatpush1.msra.mxu0 %v335
    %368 = vmatprep.subr.mxu0 0.0
    %369 = vmatpush1.msra.mxu0 %v334
    %370 = vmatprep.subr.mxu0 0.0
    %371 = vmatpush1.msra.mxu0 %v333
    %372 = vmatprep.subr.mxu0 0.0
    %373 = vmatpush2.msra.mxu0 0.0
    %374 = vmatprep.subr.mxu0 0.0
    %375 = vmatpush2.msra.mxu0 0.0
    %376 = vmatprep.subr.mxu0 0.0
    %377 = vmatpush2.msra.mxu0 0.0
    %378 = vmatprep.subr.mxu0 0.0
    %379 = vmatpush2.msra.mxu0 0.0
    %380 = vmatprep.subr.mxu0 0.0
    %381 = vmatpush2.msra.mxu0 0.0
    %382 = vmatprep.subr.mxu0 0.0
    %383 = vmatpush2.msra.mxu0 0.0
    %384 = vmatprep.subr.mxu0 0.0
    %385 = vmatpush2.msra.mxu0 0.0
    %386 = vmatprep.subr.mxu0 0.0
    %387 = vmatpush2.msra.mxu0 0.0
    %388 = vmatprep.subr.mxu0 0.0
    %389 = vmatpush2.msra.mxu0 0.0
    %390 = vmatprep.subr.mxu0 0.0
    %391 = vmatpush2.msra.mxu0 0.0
    %392 = vmatprep.subr.mxu0 0.0
    %393 = vmatpush2.msra.mxu0 0.0
    %394 = vmatprep.subr.mxu0 0.0
    %395 = vmatpush2.msra.mxu0 0.0
    %396 = vmatprep.subr.mxu0 0.0
    %397 = vmatpush2.msra.mxu0 0.0
    %398 = vmatprep.subr.mxu0 0.0
    %399 = vmatpush2.msra.mxu0 0.0
    %400 = vmatprep.subr.mxu0 0.0
    %401 = vmatpush2.msra.mxu0 0.0
    %402 = vmatprep.subr.mxu0 0.0
    %403 = vmatpush2.msra.mxu0 0.0
    %404 = vmatprep.mubr.f32.mxu0 0.0
    %405 = vmatmul.mubr.f32.gmra.mxu0 %v338
    %v406 = vpop.f32.mrf.mxu0
    %v407 = vadd.f32 0.0, %v406
    %v408 = vpop.f32.mrf.mxu0
    %409 = vdwg.mxu0
    %v410 = vrot.slane %v407, 4
    %v411 = vmax.f32 %v407, %v410
    %v412 = vrot.slane %v411, 2
    %v413 = vmax.f32 %v411, %v412
    %v414 = vrot.slane %v413, 1
    %v415 = vmax.f32 %v413, %v414
    %v416 = vsub.f32 %v407, %v415
    %v417 = vmul.f32 %v416, 1.442695
    %v418 = vpow.pop %v417
    %v419 = vrot.slane %v418, 4
    %v420 = vadd.f32 %v418, %v419
    %v421 = vrot.slane %v420, 2
    %v422 = vadd.f32 %v420, %v421
    %v423 = vrot.slane %v422, 1
    %v424 = vadd.f32 %v422, %v423
    %v425 = vlog2.pop %v424
    %v426 = vmul.f32 %v425, 0.6931472
    %v427 = vsub.f32 %v416, %v426
    %428 = vst [vmem:[%s15] sm:$0xff] %v427
    %v429 = vld [vmem:[%s2] sm:$0x1]
    %v430 = vlaneseq
    %v431 = vshrl.u32 %v430, 7
    %v432 = vlaneseq
    %v433 = vshrl.u32 %v432, 7
    %v434 = vsub.s32 0, %v433
    %v435 = vrot.slane %v429, %v434
    %vm436 = vcmp.eq.s32.totalorder %v431, %v435
    %v437 = vsel %vm436, %v427, 0.0
    %v438 = vrot.slane %v437, 4
    %v439 = vadd.f32 %v437, %v438
    %v440 = vrot.slane %v439, 2
    %v441 = vadd.f32 %v439, %v440
    %v442 = vrot.slane %v441, 1
    %v443 = vadd.f32 %v441, %v442
    %v444 = vrot.slane %v427, 4
    %v445 = vmax.f32 %v427, %v444
    %v446 = vrot.slane %v445, 2
    %v447 = vmax.f32 %v445, %v446
    %v448 = vrot.slane %v447, 1
    %v449 = vmax.f32 %v447, %v448
    %vm450 = vcmp.eq.f32.partialorder %v427, %v449
    %v451 = vsel %vm450, %v431, 8
    %v452 = vrot.slane %v451, 4
    %vm453 = vcmp.lt.s32.totalorder %v451, %v452
    %v454 = vsel %vm453, %v451, %v452
    %v455 = vrot.slane %v454, 2
    %vm456 = vcmp.lt.s32.totalorder %v454, %v455
    %v457 = vsel %vm456, %v454, %v455
    %v458 = vrot.slane %v457, 1
    %vm459 = vcmp.lt.s32.totalorder %v457, %v458
    %v460 = vsel %vm459, %v457, %v458
    %461 = vst [vmem:[%s16] sm:$0x1] %v460
    %vm462 = vcmp.ne.s32.totalorder %v429, 255
    %v463 = vld [vmem:[%s10] sm:$0xf]
    %v464 = vld [vmem:[%s10 + $0x4] sm:$0xf]
    %v465 = vld [vmem:[%s10 + $0x8] sm:$0xf]
    %v466 = vld [vmem:[%s10 + $0xc] sm:$0xf]
    %v467 = vld [vmem:[%s10 + $0x10] sm:$0xf]
    %v468 = vld [vmem:[%s10 + $0x14] sm:$0xf]
    %v469 = vld [vmem:[%s10 + $0x18] sm:$0xf]
    %v470 = vld [vmem:[%s10 + $0x1c] sm:$0xf]
    %v471 = vld [vmem:[%s1] sm:$0xff]
    %v472 = vld [vmem:[%s1 + $0x8] sm:$0xff]
    %v473 = vld [vmem:[%s1 + $0x10] sm:$0xff]
    %v474 = vld [vmem:[%s1 + $0x18] sm:$0xff]
    %v475 = vld [vmem:[%s1 + $0x20] sm:$0xff]
    %v476 = vld [vmem:[%s1 + $0x28] sm:$0xff]
    %v477 = vpack.c.bf16 %v472, %v471
    %v478 = vpack.c.bf16 %v474, %v473
    %v479 = vpack.c.bf16 %v476, %v475
    %v480 = vld [vmem:[%s11] sm:$0xff]
    %v481 = vld [vmem:[%s11 + $0x8] sm:$0xff]
    %v482 = vld [vmem:[%s11 + $0x10] sm:$0xff]
    %v483 = vld [vmem:[%s11 + $0x18] sm:$0xff]
    %v484 = vld [vmem:[%s11 + $0x20] sm:$0xff]
    %v485 = vld [vmem:[%s11 + $0x28] sm:$0xff]
    %v486 = vld [vmem:[%s11 + $0x30] sm:$0xff]
    %v487 = vld [vmem:[%s11 + $0x38] sm:$0xff]
    %489 = vset.pattern.permute.xlu0 0
    %490 = vperm.xlu0 %489, %v480
    %v491 = vpop.permute.xlu0 %490
    %494 = vset.pattern.permute.xlu0 0
    %495 = vperm.xlu0 %494, %v481
    %v496 = vpop.permute.xlu0 %495
    %499 = vset.pattern.permute.xlu0 0
    %500 = vperm.xlu0 %499, %v482
    %v501 = vpop.permute.xlu0 %500
    %504 = vset.pattern.permute.xlu0 0
    %505 = vperm.xlu0 %504, %v483
    %v506 = vpop.permute.xlu0 %505
    %509 = vset.pattern.permute.xlu0 0
    %510 = vperm.xlu0 %509, %v484
    %v511 = vpop.permute.xlu0 %510
    %514 = vset.pattern.permute.xlu0 0
    %515 = vperm.xlu0 %514, %v485
    %v516 = vpop.permute.xlu0 %515
    %519 = vset.pattern.permute.xlu0 0
    %520 = vperm.xlu0 %519, %v486
    %v521 = vpop.permute.xlu0 %520
    %524 = vset.pattern.permute.xlu0 0
    %525 = vperm.xlu0 %524, %v487
    %v526 = vpop.permute.xlu0 %525
    %v536 = vunpack.c.l.b16 %v463
    %v537 = vunpack.c.l.b16 %v464
    %v538 = vunpack.c.l.b16 %v465
    %v539 = vunpack.c.l.b16 %v466
    %v540 = vunpack.c.l.b16 %v467
    %v541 = vunpack.c.l.b16 %v468
    %v542 = vunpack.c.l.b16 %v469
    %v543 = vunpack.c.l.b16 %v470
    %v544 = vpack.c.b16 %v537, %v536
    %v545 = vpack.c.b16 %v539, %v538
    %v546 = vpack.c.b16 %v541, %v540
    %v547 = vpack.c.b16 %v543, %v542
    %v549 = vsel %vm103, %v544, 0
    %v552 = vsel %vm103, %v545, 0
    %v555 = vsel %vm103, %v546, 0
    %v558 = vsel %vm103, %v547, 0
    %560 = vmatprep.subr.bf16.mxu0 0
    %561 = vmatpush1.bf16.msra.mxu0 0
    %562 = vmatprep.subr.bf16.mxu0 0
    %563 = vmatpush1.bf16.msra.mxu0 0
    %564 = vmatprep.subr.bf16.mxu0 0
    %565 = vmatpush1.bf16.msra.mxu0 0
    %566 = vmatprep.subr.bf16.mxu0 0
    %567 = vmatpush1.bf16.msra.mxu0 0
    %568 = vmatprep.subr.bf16.mxu0 0
    %569 = vmatpush1.bf16.msra.mxu0 0
    %570 = vmatprep.subr.bf16.mxu0 0
    %571 = vmatpush1.bf16.msra.mxu0 %v479
    %572 = vmatprep.subr.bf16.mxu0 0
    %573 = vmatpush1.bf16.msra.mxu0 %v478
    %574 = vmatprep.subr.bf16.mxu0 0
    %575 = vmatpush1.bf16.msra.mxu0 %v477
    %576 = vmatprep.subr.bf16.mxu0 0
    %577 = vmatpush2.bf16.msra.mxu0 0
    %578 = vmatprep.subr.bf16.mxu0 0
    %579 = vmatpush2.bf16.msra.mxu0 0
    %580 = vmatprep.subr.bf16.mxu0 0
    %581 = vmatpush2.bf16.msra.mxu0 0
    %582 = vmatprep.subr.bf16.mxu0 0
    %583 = vmatpush2.bf16.msra.mxu0 0
    %584 = vmatprep.subr.bf16.mxu0 0
    %585 = vmatpush2.bf16.msra.mxu0 0
    %586 = vmatprep.subr.bf16.mxu0 0
    %587 = vmatpush2.bf16.msra.mxu0 0
    %588 = vmatprep.subr.bf16.mxu0 0
    %589 = vmatpush2.bf16.msra.mxu0 0
    %590 = vmatprep.subr.bf16.mxu0 0
    %591 = vmatpush2.bf16.msra.mxu0 0
    %592 = vmatprep.mubr.bf16.mxu0 0
    %593 = vmatmul.mubr.bf16.gmra.mxu0 %v549
    %v594 = vpop.f32.mrf.mxu0
    %v595 = vadd.f32 %v491, %v594
    %v596 = vpop.f32.mrf.mxu0
    %v597 = vpop.f32.mrf.mxu0
    %v598 = vadd.f32 %v496, %v597
    %v599 = vpop.f32.mrf.mxu0
    %600 = vmatprep.mubr.bf16.mxu0 0
    %601 = vmatmul.mubr.bf16.gmra.mxu0 %v552
    %v602 = vpop.f32.mrf.mxu0
    %v603 = vadd.f32 %v501, %v602
    %v604 = vpop.f32.mrf.mxu0
    %v605 = vpop.f32.mrf.mxu0
    %v606 = vadd.f32 %v506, %v605
    %v607 = vpop.f32.mrf.mxu0
    %608 = vmatprep.mubr.bf16.mxu0 0
    %609 = vmatmul.mubr.bf16.gmra.mxu0 %v555
    %v610 = vpop.f32.mrf.mxu0
    %v611 = vadd.f32 %v511, %v610
    %v612 = vpop.f32.mrf.mxu0
    %v613 = vpop.f32.mrf.mxu0
    %v614 = vadd.f32 %v516, %v613
    %v615 = vpop.f32.mrf.mxu0
    %616 = vmatprep.mubr.bf16.mxu0 0
    %617 = vmatmul.mubr.bf16.gmra.mxu0 %v558
    %v618 = vpop.f32.mrf.mxu0
    %v619 = vadd.f32 %v521, %v618
    %v620 = vpop.f32.mrf.mxu0
    %v621 = vpop.f32.mrf.mxu0
    %v622 = vadd.f32 %v526, %v621
    %v623 = vpop.f32.mrf.mxu0
    %624 = vdwg.mxu0
    %v625 = vld [vmem:[%s12] sm:$0xff]
    %v626 = vld [vmem:[%s12 + $0x8] sm:$0xff]
    %v627 = vld [vmem:[%s12 + $0x10] sm:$0xff]
    %v628 = vld [vmem:[%s12 + $0x18] sm:$0xff]
    %v629 = vld [vmem:[%s12 + $0x20] sm:$0xff]
    %v630 = vld [vmem:[%s12 + $0x28] sm:$0xff]
    %v631 = vld [vmem:[%s12 + $0x30] sm:$0xff]
    %v632 = vld [vmem:[%s12 + $0x38] sm:$0xff]
    %v633 = vld [vmem:[%s13] sm:$0xff]
    %v634 = vld [vmem:[%s13 + $0x8] sm:$0xff]
    %v635 = vld [vmem:[%s13 + $0x10] sm:$0xff]
    %v636 = vld [vmem:[%s13 + $0x18] sm:$0xff]
    %v638 = vsel %vm159, %v595, 0
    %v641 = vsel %vm159, %v598, 0
    %v644 = vsel %vm159, %v603, 0
    %v647 = vsel %vm159, %v606, 0
    %v650 = vsel %vm159, %v611, 0
    %v653 = vsel %vm159, %v614, 0
    %v656 = vsel %vm159, %v619, 0
    %v659 = vsel %vm159, %v622, 0
    %661 = vmatprep.subr.mxu0 0.0
    %662 = vmatpush1.msra.mxu0 0.0
    %663 = vmatprep.subr.mxu0 0.0
    %664 = vmatpush1.msra.mxu0 0.0
    %665 = vmatprep.subr.mxu0 0.0
    %666 = vmatpush1.msra.mxu0 0.0
    %667 = vmatprep.subr.mxu0 0.0
    %668 = vmatpush1.msra.mxu0 0.0
    %669 = vmatprep.subr.mxu0 0.0
    %670 = vmatpush1.msra.mxu0 0.0
    %671 = vmatprep.subr.mxu0 0.0
    %672 = vmatpush1.msra.mxu0 0.0
    %673 = vmatprep.subr.mxu0 0.0
    %674 = vmatpush1.msra.mxu0 0.0
    %675 = vmatprep.subr.mxu0 0.0
    %676 = vmatpush1.msra.mxu0 0.0
    %677 = vmatprep.subr.mxu0 0.0
    %678 = vmatpush1.msra.mxu0 0.0
    %679 = vmatprep.subr.mxu0 0.0
    %680 = vmatpush1.msra.mxu0 0.0
    %681 = vmatprep.subr.mxu0 0.0
    %682 = vmatpush1.msra.mxu0 0.0
    %683 = vmatprep.subr.mxu0 0.0
    %684 = vmatpush1.msra.mxu0 0.0
    %685 = vmatprep.subr.mxu0 0.0
    %686 = vmatpush1.msra.mxu0 %v636
    %687 = vmatprep.subr.mxu0 0.0
    %688 = vmatpush1.msra.mxu0 %v635
    %689 = vmatprep.subr.mxu0 0.0
    %690 = vmatpush1.msra.mxu0 %v634
    %691 = vmatprep.subr.mxu0 0.0
    %692 = vmatpush1.msra.mxu0 %v633
    %693 = vmatprep.subr.mxu0 0.0
    %694 = vmatpush2.msra.mxu0 0.0
    %695 = vmatprep.subr.mxu0 0.0
    %696 = vmatpush2.msra.mxu0 0.0
    %697 = vmatprep.subr.mxu0 0.0
    %698 = vmatpush2.msra.mxu0 0.0
    %699 = vmatprep.subr.mxu0 0.0
    %700 = vmatpush2.msra.mxu0 0.0
    %701 = vmatprep.subr.mxu0 0.0
    %702 = vmatpush2.msra.mxu0 0.0
    %703 = vmatprep.subr.mxu0 0.0
    %704 = vmatpush2.msra.mxu0 0.0
    %705 = vmatprep.subr.mxu0 0.0
    %706 = vmatpush2.msra.mxu0 0.0
    %707 = vmatprep.subr.mxu0 0.0
    %708 = vmatpush2.msra.mxu0 0.0
    %709 = vmatprep.subr.mxu0 0.0
    %710 = vmatpush2.msra.mxu0 0.0
    %711 = vmatprep.subr.mxu0 0.0
    %712 = vmatpush2.msra.mxu0 0.0
    %713 = vmatprep.subr.mxu0 0.0
    %714 = vmatpush2.msra.mxu0 0.0
    %715 = vmatprep.subr.mxu0 0.0
    %716 = vmatpush2.msra.mxu0 0.0
    %717 = vmatprep.subr.mxu0 0.0
    %718 = vmatpush2.msra.mxu0 0.0
    %719 = vmatprep.subr.mxu0 0.0
    %720 = vmatpush2.msra.mxu0 0.0
    %721 = vmatprep.subr.mxu0 0.0
    %722 = vmatpush2.msra.mxu0 0.0
    %723 = vmatprep.subr.mxu0 0.0
    %724 = vmatpush2.msra.mxu0 0.0
    %725 = vmatprep.mubr.f32.mxu0 0.0
    %726 = vmatmul.mubr.f32.gmra.mxu0 %v638
    %v727 = vpop.f32.mrf.mxu0
    %v728 = vadd.f32 0.0, %v727
    %v729 = vpop.f32.mrf.mxu0
    %730 = vmatprep.mubr.f32.mxu0 0.0
    %731 = vmatmul.mubr.f32.gmra.mxu0 %v641
    %v732 = vpop.f32.mrf.mxu0
    %v733 = vadd.f32 0.0, %v732
    %v734 = vpop.f32.mrf.mxu0
    %735 = vmatprep.mubr.f32.mxu0 0.0
    %736 = vmatmul.mubr.f32.gmra.mxu0 %v644
    %v737 = vpop.f32.mrf.mxu0
    %v738 = vadd.f32 0.0, %v737
    %v739 = vpop.f32.mrf.mxu0
    %740 = vmatprep.mubr.f32.mxu0 0.0
    %741 = vmatmul.mubr.f32.gmra.mxu0 %v647
    %v742 = vpop.f32.mrf.mxu0
    %v743 = vadd.f32 0.0, %v742
    %v744 = vpop.f32.mrf.mxu0
    %745 = vmatprep.mubr.f32.mxu0 0.0
    %746 = vmatmul.mubr.f32.gmra.mxu0 %v650
    %v747 = vpop.f32.mrf.mxu0
    %v748 = vadd.f32 0.0, %v747
    %v749 = vpop.f32.mrf.mxu0
    %750 = vmatprep.mubr.f32.mxu0 0.0
    %751 = vmatmul.mubr.f32.gmra.mxu0 %v653
    %v752 = vpop.f32.mrf.mxu0
    %v753 = vadd.f32 0.0, %v752
    %v754 = vpop.f32.mrf.mxu0
    %755 = vmatprep.mubr.f32.mxu0 0.0
    %756 = vmatmul.mubr.f32.gmra.mxu0 %v656
    %v757 = vpop.f32.mrf.mxu0
    %v758 = vadd.f32 0.0, %v757
    %v759 = vpop.f32.mrf.mxu0
    %760 = vmatprep.mubr.f32.mxu0 0.0
    %761 = vmatmul.mubr.f32.gmra.mxu0 %v659
    %v762 = vpop.f32.mrf.mxu0
    %v763 = vadd.f32 0.0, %v762
    %v764 = vpop.f32.mrf.mxu0
    %765 = vdwg.mxu0
    %767 = vset.pattern.permute.xlu0 0
    %768 = vperm.xlu0 %767, %v625
    %v769 = vpop.permute.xlu0 %768
    %772 = vset.pattern.permute.xlu0 0
    %773 = vperm.xlu0 %772, %v626
    %v774 = vpop.permute.xlu0 %773
    %777 = vset.pattern.permute.xlu0 0
    %778 = vperm.xlu0 %777, %v627
    %v779 = vpop.permute.xlu0 %778
    %782 = vset.pattern.permute.xlu0 0
    %783 = vperm.xlu0 %782, %v628
    %v784 = vpop.permute.xlu0 %783
    %787 = vset.pattern.permute.xlu0 0
    %788 = vperm.xlu0 %787, %v629
    %v789 = vpop.permute.xlu0 %788
    %792 = vset.pattern.permute.xlu0 0
    %793 = vperm.xlu0 %792, %v630
    %v794 = vpop.permute.xlu0 %793
    %797 = vset.pattern.permute.xlu0 0
    %798 = vperm.xlu0 %797, %v631
    %v799 = vpop.permute.xlu0 %798
    %802 = vset.pattern.permute.xlu0 0
    %803 = vperm.xlu0 %802, %v632
    %v804 = vpop.permute.xlu0 %803
    %v806 = vmul.f32 %v769, %v728
    %v807 = vmul.f32 %v774, %v733
    %v808 = vmul.f32 %v779, %v738
    %v809 = vmul.f32 %v784, %v743
    %v810 = vmul.f32 %v789, %v748
    %v811 = vmul.f32 %v794, %v753
    %v812 = vmul.f32 %v799, %v758
    %v813 = vmul.f32 %v804, %v763
    %v814 = vadd.f32 %v806, 0.0
    %v815 = vadd.f32 %v807, 0.0
    %v816 = vadd.f32 %v808, 0.0
    %v817 = vadd.f32 %v809, 0.0
    %v818 = vadd.f32 %v810, 0.0
    %v819 = vadd.f32 %v811, 0.0
    %v820 = vadd.f32 %v812, 0.0
    %v821 = vadd.f32 %v813, 0.0
    %s822 = scalar_lea.vmem %s13, 32
    %v823 = vld [vmem:[%s822] sm:$0xff]
    %v824 = vld [vmem:[%s822 + $0x8] sm:$0xff]
    %v825 = vld [vmem:[%s822 + $0x10] sm:$0xff]
    %v826 = vld [vmem:[%s822 + $0x18] sm:$0xff]
    %827 = vmatprep.subr.mxu0 0.0
    %828 = vmatpush1.msra.mxu0 0.0
    %829 = vmatprep.subr.mxu0 0.0
    %830 = vmatpush1.msra.mxu0 0.0
    %831 = vmatprep.subr.mxu0 0.0
    %832 = vmatpush1.msra.mxu0 0.0
    %833 = vmatprep.subr.mxu0 0.0
    %834 = vmatpush1.msra.mxu0 0.0
    %835 = vmatprep.subr.mxu0 0.0
    %836 = vmatpush1.msra.mxu0 0.0
    %837 = vmatprep.subr.mxu0 0.0
    %838 = vmatpush1.msra.mxu0 0.0
    %839 = vmatprep.subr.mxu0 0.0
    %840 = vmatpush1.msra.mxu0 0.0
    %841 = vmatprep.subr.mxu0 0.0
    %842 = vmatpush1.msra.mxu0 0.0
    %843 = vmatprep.subr.mxu0 0.0
    %844 = vmatpush1.msra.mxu0 0.0
    %845 = vmatprep.subr.mxu0 0.0
    %846 = vmatpush1.msra.mxu0 0.0
    %847 = vmatprep.subr.mxu0 0.0
    %848 = vmatpush1.msra.mxu0 0.0
    %849 = vmatprep.subr.mxu0 0.0
    %850 = vmatpush1.msra.mxu0 0.0
    %851 = vmatprep.subr.mxu0 0.0
    %852 = vmatpush1.msra.mxu0 %v826
    %853 = vmatprep.subr.mxu0 0.0
    %854 = vmatpush1.msra.mxu0 %v825
    %855 = vmatprep.subr.mxu0 0.0
    %856 = vmatpush1.msra.mxu0 %v824
    %857 = vmatprep.subr.mxu0 0.0
    %858 = vmatpush1.msra.mxu0 %v823
    %859 = vmatprep.subr.mxu0 0.0
    %860 = vmatpush2.msra.mxu0 0.0
    %861 = vmatprep.subr.mxu0 0.0
    %862 = vmatpush2.msra.mxu0 0.0
    %863 = vmatprep.subr.mxu0 0.0
    %864 = vmatpush2.msra.mxu0 0.0
    %865 = vmatprep.subr.mxu0 0.0
    %866 = vmatpush2.msra.mxu0 0.0
    %867 = vmatprep.subr.mxu0 0.0
    %868 = vmatpush2.msra.mxu0 0.0
    %869 = vmatprep.subr.mxu0 0.0
    %870 = vmatpush2.msra.mxu0 0.0
    %871 = vmatprep.subr.mxu0 0.0
    %872 = vmatpush2.msra.mxu0 0.0
    %873 = vmatprep.subr.mxu0 0.0
    %874 = vmatpush2.msra.mxu0 0.0
    %875 = vmatprep.subr.mxu0 0.0
    %876 = vmatpush2.msra.mxu0 0.0
    %877 = vmatprep.subr.mxu0 0.0
    %878 = vmatpush2.msra.mxu0 0.0
    %879 = vmatprep.subr.mxu0 0.0
    %880 = vmatpush2.msra.mxu0 0.0
    %881 = vmatprep.subr.mxu0 0.0
    %882 = vmatpush2.msra.mxu0 0.0
    %883 = vmatprep.subr.mxu0 0.0
    %884 = vmatpush2.msra.mxu0 0.0
    %885 = vmatprep.subr.mxu0 0.0
    %886 = vmatpush2.msra.mxu0 0.0
    %887 = vmatprep.subr.mxu0 0.0
    %888 = vmatpush2.msra.mxu0 0.0
    %889 = vmatprep.subr.mxu0 0.0
    %890 = vmatpush2.msra.mxu0 0.0
    %891 = vmatprep.mubr.f32.mxu0 0.0
    %892 = vmatmul.mubr.f32.gmra.mxu0 %v638
    %v893 = vpop.f32.mrf.mxu0
    %v894 = vadd.f32 0.0, %v893
    %v895 = vpop.f32.mrf.mxu0
    %896 = vmatprep.mubr.f32.mxu0 0.0
    %897 = vmatmul.mubr.f32.gmra.mxu0 %v641
    %v898 = vpop.f32.mrf.mxu0
    %v899 = vadd.f32 0.0, %v898
    %v900 = vpop.f32.mrf.mxu0
    %901 = vmatprep.mubr.f32.mxu0 0.0
    %902 = vmatmul.mubr.f32.gmra.mxu0 %v644
    %v903 = vpop.f32.mrf.mxu0
    %v904 = vadd.f32 0.0, %v903
    %v905 = vpop.f32.mrf.mxu0
    %906 = vmatprep.mubr.f32.mxu0 0.0
    %907 = vmatmul.mubr.f32.gmra.mxu0 %v647
    %v908 = vpop.f32.mrf.mxu0
    %v909 = vadd.f32 0.0, %v908
    %v910 = vpop.f32.mrf.mxu0
    %911 = vmatprep.mubr.f32.mxu0 0.0
    %912 = vmatmul.mubr.f32.gmra.mxu0 %v650
    %v913 = vpop.f32.mrf.mxu0
    %v914 = vadd.f32 0.0, %v913
    %v915 = vpop.f32.mrf.mxu0
    %916 = vmatprep.mubr.f32.mxu0 0.0
    %917 = vmatmul.mubr.f32.gmra.mxu0 %v653
    %v918 = vpop.f32.mrf.mxu0
    %v919 = vadd.f32 0.0, %v918
    %v920 = vpop.f32.mrf.mxu0
    %921 = vmatprep.mubr.f32.mxu0 0.0
    %922 = vmatmul.mubr.f32.gmra.mxu0 %v656
    %v923 = vpop.f32.mrf.mxu0
    %v924 = vadd.f32 0.0, %v923
    %v925 = vpop.f32.mrf.mxu0
    %926 = vmatprep.mubr.f32.mxu0 0.0
    %927 = vmatmul.mubr.f32.gmra.mxu0 %v659
    %v928 = vpop.f32.mrf.mxu0
    %v929 = vadd.f32 0.0, %v928
    %v930 = vpop.f32.mrf.mxu0
    %931 = vdwg.mxu0
    %932 = vset.pattern.permute.xlu0 1
    %933 = vperm.xlu0 %932, %v625
    %v934 = vpop.permute.xlu0 %933
    %936 = vset.pattern.permute.xlu0 1
    %937 = vperm.xlu0 %936, %v626
    %v938 = vpop.permute.xlu0 %937
    %940 = vset.pattern.permute.xlu0 1
    %941 = vperm.xlu0 %940, %v627
    %v942 = vpop.permute.xlu0 %941
    %944 = vset.pattern.permute.xlu0 1
    %945 = vperm.xlu0 %944, %v628
    %v946 = vpop.permute.xlu0 %945
    %948 = vset.pattern.permute.xlu0 1
    %949 = vperm.xlu0 %948, %v629
    %v950 = vpop.permute.xlu0 %949
    %952 = vset.pattern.permute.xlu0 1
    %953 = vperm.xlu0 %952, %v630
    %v954 = vpop.permute.xlu0 %953
    %956 = vset.pattern.permute.xlu0 1
    %957 = vperm.xlu0 %956, %v631
    %v958 = vpop.permute.xlu0 %957
    %960 = vset.pattern.permute.xlu0 1
    %961 = vperm.xlu0 %960, %v632
    %v962 = vpop.permute.xlu0 %961
    %v964 = vmul.f32 %v934, %v894
    %v965 = vmul.f32 %v938, %v899
    %v966 = vmul.f32 %v942, %v904
    %v967 = vmul.f32 %v946, %v909
    %v968 = vmul.f32 %v950, %v914
    %v969 = vmul.f32 %v954, %v919
    %v970 = vmul.f32 %v958, %v924
    %v971 = vmul.f32 %v962, %v929
    %v972 = vadd.f32 %v814, %v964
    %v973 = vadd.f32 %v815, %v965
    %v974 = vadd.f32 %v816, %v966
    %v975 = vadd.f32 %v817, %v967
    %v976 = vadd.f32 %v818, %v968
    %v977 = vadd.f32 %v819, %v969
    %v978 = vadd.f32 %v820, %v970
    %v979 = vadd.f32 %v821, %v971
    %s980 = scalar_lea.vmem %s13, 64
    %v981 = vld [vmem:[%s980] sm:$0xff]
    %v982 = vld [vmem:[%s980 + $0x8] sm:$0xff]
    %v983 = vld [vmem:[%s980 + $0x10] sm:$0xff]
    %v984 = vld [vmem:[%s980 + $0x18] sm:$0xff]
    %985 = vmatprep.subr.mxu0 0.0
    %986 = vmatpush1.msra.mxu0 0.0
    %987 = vmatprep.subr.mxu0 0.0
    %988 = vmatpush1.msra.mxu0 0.0
    %989 = vmatprep.subr.mxu0 0.0
    %990 = vmatpush1.msra.mxu0 0.0
    %991 = vmatprep.subr.mxu0 0.0
    %992 = vmatpush1.msra.mxu0 0.0
    %993 = vmatprep.subr.mxu0 0.0
    %994 = vmatpush1.msra.mxu0 0.0
    %995 = vmatprep.subr.mxu0 0.0
    %996 = vmatpush1.msra.mxu0 0.0
    %997 = vmatprep.subr.mxu0 0.0
    %998 = vmatpush1.msra.mxu0 0.0
    %999 = vmatprep.subr.mxu0 0.0
    %1000 = vmatpush1.msra.mxu0 0.0
    %1001 = vmatprep.subr.mxu0 0.0
    %1002 = vmatpush1.msra.mxu0 0.0
    %1003 = vmatprep.subr.mxu0 0.0
    %1004 = vmatpush1.msra.mxu0 0.0
    %1005 = vmatprep.subr.mxu0 0.0
    %1006 = vmatpush1.msra.mxu0 0.0
    %1007 = vmatprep.subr.mxu0 0.0
    %1008 = vmatpush1.msra.mxu0 0.0
    %1009 = vmatprep.subr.mxu0 0.0
    %1010 = vmatpush1.msra.mxu0 %v984
    %1011 = vmatprep.subr.mxu0 0.0
    %1012 = vmatpush1.msra.mxu0 %v983
    %1013 = vmatprep.subr.mxu0 0.0
    %1014 = vmatpush1.msra.mxu0 %v982
    %1015 = vmatprep.subr.mxu0 0.0
    %1016 = vmatpush1.msra.mxu0 %v981
    %1017 = vmatprep.subr.mxu0 0.0
    %1018 = vmatpush2.msra.mxu0 0.0
    %1019 = vmatprep.subr.mxu0 0.0
    %1020 = vmatpush2.msra.mxu0 0.0
    %1021 = vmatprep.subr.mxu0 0.0
    %1022 = vmatpush2.msra.mxu0 0.0
    %1023 = vmatprep.subr.mxu0 0.0
    %1024 = vmatpush2.msra.mxu0 0.0
    %1025 = vmatprep.subr.mxu0 0.0
    %1026 = vmatpush2.msra.mxu0 0.0
    %1027 = vmatprep.subr.mxu0 0.0
    %1028 = vmatpush2.msra.mxu0 0.0
    %1029 = vmatprep.subr.mxu0 0.0
    %1030 = vmatpush2.msra.mxu0 0.0
    %1031 = vmatprep.subr.mxu0 0.0
    %1032 = vmatpush2.msra.mxu0 0.0
    %1033 = vmatprep.subr.mxu0 0.0
    %1034 = vmatpush2.msra.mxu0 0.0
    %1035 = vmatprep.subr.mxu0 0.0
    %1036 = vmatpush2.msra.mxu0 0.0
    %1037 = vmatprep.subr.mxu0 0.0
    %1038 = vmatpush2.msra.mxu0 0.0
    %1039 = vmatprep.subr.mxu0 0.0
    %1040 = vmatpush2.msra.mxu0 0.0
    %1041 = vmatprep.subr.mxu0 0.0
    %1042 = vmatpush2.msra.mxu0 0.0
    %1043 = vmatprep.subr.mxu0 0.0
    %1044 = vmatpush2.msra.mxu0 0.0
    %1045 = vmatprep.subr.mxu0 0.0
    %1046 = vmatpush2.msra.mxu0 0.0
    %1047 = vmatprep.subr.mxu0 0.0
    %1048 = vmatpush2.msra.mxu0 0.0
    %1049 = vmatprep.mubr.f32.mxu0 0.0
    %1050 = vmatmul.mubr.f32.gmra.mxu0 %v638
    %v1051 = vpop.f32.mrf.mxu0
    %v1052 = vadd.f32 0.0, %v1051
    %v1053 = vpop.f32.mrf.mxu0
    %1054 = vmatprep.mubr.f32.mxu0 0.0
    %1055 = vmatmul.mubr.f32.gmra.mxu0 %v641
    %v1056 = vpop.f32.mrf.mxu0
    %v1057 = vadd.f32 0.0, %v1056
    %v1058 = vpop.f32.mrf.mxu0
    %1059 = vmatprep.mubr.f32.mxu0 0.0
    %1060 = vmatmul.mubr.f32.gmra.mxu0 %v644
    %v1061 = vpop.f32.mrf.mxu0
    %v1062 = vadd.f32 0.0, %v1061
    %v1063 = vpop.f32.mrf.mxu0
    %1064 = vmatprep.mubr.f32.mxu0 0.0
    %1065 = vmatmul.mubr.f32.gmra.mxu0 %v647
    %v1066 = vpop.f32.mrf.mxu0
    %v1067 = vadd.f32 0.0, %v1066
    %v1068 = vpop.f32.mrf.mxu0
    %1069 = vmatprep.mubr.f32.mxu0 0.0
    %1070 = vmatmul.mubr.f32.gmra.mxu0 %v650
    %v1071 = vpop.f32.mrf.mxu0
    %v1072 = vadd.f32 0.0, %v1071
    %v1073 = vpop.f32.mrf.mxu0
    %1074 = vmatprep.mubr.f32.mxu0 0.0
    %1075 = vmatmul.mubr.f32.gmra.mxu0 %v653
    %v1076 = vpop.f32.mrf.mxu0
    %v1077 = vadd.f32 0.0, %v1076
    %v1078 = vpop.f32.mrf.mxu0
    %1079 = vmatprep.mubr.f32.mxu0 0.0
    %1080 = vmatmul.mubr.f32.gmra.mxu0 %v656
    %v1081 = vpop.f32.mrf.mxu0
    %v1082 = vadd.f32 0.0, %v1081
    %v1083 = vpop.f32.mrf.mxu0
    %1084 = vmatprep.mubr.f32.mxu0 0.0
    %1085 = vmatmul.mubr.f32.gmra.mxu0 %v659
    %v1086 = vpop.f32.mrf.mxu0
    %v1087 = vadd.f32 0.0, %v1086
    %v1088 = vpop.f32.mrf.mxu0
    %1089 = vdwg.mxu0
    %1090 = vset.pattern.permute.xlu0 2
    %1091 = vperm.xlu0 %1090, %v625
    %v1092 = vpop.permute.xlu0 %1091
    %1094 = vset.pattern.permute.xlu0 2
    %1095 = vperm.xlu0 %1094, %v626
    %v1096 = vpop.permute.xlu0 %1095
    %1098 = vset.pattern.permute.xlu0 2
    %1099 = vperm.xlu0 %1098, %v627
    %v1100 = vpop.permute.xlu0 %1099
    %1102 = vset.pattern.permute.xlu0 2
    %1103 = vperm.xlu0 %1102, %v628
    %v1104 = vpop.permute.xlu0 %1103
    %1106 = vset.pattern.permute.xlu0 2
    %1107 = vperm.xlu0 %1106, %v629
    %v1108 = vpop.permute.xlu0 %1107
    %1110 = vset.pattern.permute.xlu0 2
    %1111 = vperm.xlu0 %1110, %v630
    %v1112 = vpop.permute.xlu0 %1111
    %1114 = vset.pattern.permute.xlu0 2
    %1115 = vperm.xlu0 %1114, %v631
    %v1116 = vpop.permute.xlu0 %1115
    %1118 = vset.pattern.permute.xlu0 2
    %1119 = vperm.xlu0 %1118, %v632
    %v1120 = vpop.permute.xlu0 %1119
    %v1122 = vmul.f32 %v1092, %v1052
    %v1123 = vmul.f32 %v1096, %v1057
    %v1124 = vmul.f32 %v1100, %v1062
    %v1125 = vmul.f32 %v1104, %v1067
    %v1126 = vmul.f32 %v1108, %v1072
    %v1127 = vmul.f32 %v1112, %v1077
    %v1128 = vmul.f32 %v1116, %v1082
    %v1129 = vmul.f32 %v1120, %v1087
    %v1130 = vadd.f32 %v972, %v1122
    %v1131 = vadd.f32 %v973, %v1123
    %v1132 = vadd.f32 %v974, %v1124
    %v1133 = vadd.f32 %v975, %v1125
    %v1134 = vadd.f32 %v976, %v1126
    %v1135 = vadd.f32 %v977, %v1127
    %v1136 = vadd.f32 %v978, %v1128
    %v1137 = vadd.f32 %v979, %v1129
    %s1138 = scalar_lea.vmem %s13, 96
    %v1139 = vld [vmem:[%s1138] sm:$0xff]
    %v1140 = vld [vmem:[%s1138 + $0x8] sm:$0xff]
    %v1141 = vld [vmem:[%s1138 + $0x10] sm:$0xff]
    %v1142 = vld [vmem:[%s1138 + $0x18] sm:$0xff]
    %1143 = vmatprep.subr.mxu0 0.0
    %1144 = vmatpush1.msra.mxu0 0.0
    %1145 = vmatprep.subr.mxu0 0.0
    %1146 = vmatpush1.msra.mxu0 0.0
    %1147 = vmatprep.subr.mxu0 0.0
    %1148 = vmatpush1.msra.mxu0 0.0
    %1149 = vmatprep.subr.mxu0 0.0
    %1150 = vmatpush1.msra.mxu0 0.0
    %1151 = vmatprep.subr.mxu0 0.0
    %1152 = vmatpush1.msra.mxu0 0.0
    %1153 = vmatprep.subr.mxu0 0.0
    %1154 = vmatpush1.msra.mxu0 0.0
    %1155 = vmatprep.subr.mxu0 0.0
    %1156 = vmatpush1.msra.mxu0 0.0
    %1157 = vmatprep.subr.mxu0 0.0
    %1158 = vmatpush1.msra.mxu0 0.0
    %1159 = vmatprep.subr.mxu0 0.0
    %1160 = vmatpush1.msra.mxu0 0.0
    %1161 = vmatprep.subr.mxu0 0.0
    %1162 = vmatpush1.msra.mxu0 0.0
    %1163 = vmatprep.subr.mxu0 0.0
    %1164 = vmatpush1.msra.mxu0 0.0
    %1165 = vmatprep.subr.mxu0 0.0
    %1166 = vmatpush1.msra.mxu0 0.0
    %1167 = vmatprep.subr.mxu0 0.0
    %1168 = vmatpush1.msra.mxu0 %v1142
    %1169 = vmatprep.subr.mxu0 0.0
    %1170 = vmatpush1.msra.mxu0 %v1141
    %1171 = vmatprep.subr.mxu0 0.0
    %1172 = vmatpush1.msra.mxu0 %v1140
    %1173 = vmatprep.subr.mxu0 0.0
    %1174 = vmatpush1.msra.mxu0 %v1139
    %1175 = vmatprep.subr.mxu0 0.0
    %1176 = vmatpush2.msra.mxu0 0.0
    %1177 = vmatprep.subr.mxu0 0.0
    %1178 = vmatpush2.msra.mxu0 0.0
    %1179 = vmatprep.subr.mxu0 0.0
    %1180 = vmatpush2.msra.mxu0 0.0
    %1181 = vmatprep.subr.mxu0 0.0
    %1182 = vmatpush2.msra.mxu0 0.0
    %1183 = vmatprep.subr.mxu0 0.0
    %1184 = vmatpush2.msra.mxu0 0.0
    %1185 = vmatprep.subr.mxu0 0.0
    %1186 = vmatpush2.msra.mxu0 0.0
    %1187 = vmatprep.subr.mxu0 0.0
    %1188 = vmatpush2.msra.mxu0 0.0
    %1189 = vmatprep.subr.mxu0 0.0
    %1190 = vmatpush2.msra.mxu0 0.0
    %1191 = vmatprep.subr.mxu0 0.0
    %1192 = vmatpush2.msra.mxu0 0.0
    %1193 = vmatprep.subr.mxu0 0.0
    %1194 = vmatpush2.msra.mxu0 0.0
    %1195 = vmatprep.subr.mxu0 0.0
    %1196 = vmatpush2.msra.mxu0 0.0
    %1197 = vmatprep.subr.mxu0 0.0
    %1198 = vmatpush2.msra.mxu0 0.0
    %1199 = vmatprep.subr.mxu0 0.0
    %1200 = vmatpush2.msra.mxu0 0.0
    %1201 = vmatprep.subr.mxu0 0.0
    %1202 = vmatpush2.msra.mxu0 0.0
    %1203 = vmatprep.subr.mxu0 0.0
    %1204 = vmatpush2.msra.mxu0 0.0
    %1205 = vmatprep.subr.mxu0 0.0
    %1206 = vmatpush2.msra.mxu0 0.0
    %1207 = vmatprep.mubr.f32.mxu0 0.0
    %1208 = vmatmul.mubr.f32.gmra.mxu0 %v638
    %v1209 = vpop.f32.mrf.mxu0
    %v1210 = vadd.f32 0.0, %v1209
    %v1211 = vpop.f32.mrf.mxu0
    %1212 = vmatprep.mubr.f32.mxu0 0.0
    %1213 = vmatmul.mubr.f32.gmra.mxu0 %v641
    %v1214 = vpop.f32.mrf.mxu0
    %v1215 = vadd.f32 0.0, %v1214
    %v1216 = vpop.f32.mrf.mxu0
    %1217 = vmatprep.mubr.f32.mxu0 0.0
    %1218 = vmatmul.mubr.f32.gmra.mxu0 %v644
    %v1219 = vpop.f32.mrf.mxu0
    %v1220 = vadd.f32 0.0, %v1219
    %v1221 = vpop.f32.mrf.mxu0
    %1222 = vmatprep.mubr.f32.mxu0 0.0
    %1223 = vmatmul.mubr.f32.gmra.mxu0 %v647
    %v1224 = vpop.f32.mrf.mxu0
    %v1225 = vadd.f32 0.0, %v1224
    %v1226 = vpop.f32.mrf.mxu0
    %1227 = vmatprep.mubr.f32.mxu0 0.0
    %1228 = vmatmul.mubr.f32.gmra.mxu0 %v650
    %v1229 = vpop.f32.mrf.mxu0
    %v1230 = vadd.f32 0.0, %v1229
    %v1231 = vpop.f32.mrf.mxu0
    %1232 = vmatprep.mubr.f32.mxu0 0.0
    %1233 = vmatmul.mubr.f32.gmra.mxu0 %v653
    %v1234 = vpop.f32.mrf.mxu0
    %v1235 = vadd.f32 0.0, %v1234
    %v1236 = vpop.f32.mrf.mxu0
    %1237 = vmatprep.mubr.f32.mxu0 0.0
    %1238 = vmatmul.mubr.f32.gmra.mxu0 %v656
    %v1239 = vpop.f32.mrf.mxu0
    %v1240 = vadd.f32 0.0, %v1239
    %v1241 = vpop.f32.mrf.mxu0
    %1242 = vmatprep.mubr.f32.mxu0 0.0
    %1243 = vmatmul.mubr.f32.gmra.mxu0 %v659
    %v1244 = vpop.f32.mrf.mxu0
    %v1245 = vadd.f32 0.0, %v1244
    %v1246 = vpop.f32.mrf.mxu0
    %1247 = vdwg.mxu0
    %1248 = vset.pattern.permute.xlu0 3
    %1249 = vperm.xlu0 %1248, %v625
    %v1250 = vpop.permute.xlu0 %1249
    %1252 = vset.pattern.permute.xlu0 3
    %1253 = vperm.xlu0 %1252, %v626
    %v1254 = vpop.permute.xlu0 %1253
    %1256 = vset.pattern.permute.xlu0 3
    %1257 = vperm.xlu0 %1256, %v627
    %v1258 = vpop.permute.xlu0 %1257
    %1260 = vset.pattern.permute.xlu0 3
    %1261 = vperm.xlu0 %1260, %v628
    %v1262 = vpop.permute.xlu0 %1261
    %1264 = vset.pattern.permute.xlu0 3
    %1265 = vperm.xlu0 %1264, %v629
    %v1266 = vpop.permute.xlu0 %1265
    %1268 = vset.pattern.permute.xlu0 3
    %1269 = vperm.xlu0 %1268, %v630
    %v1270 = vpop.permute.xlu0 %1269
    %1272 = vset.pattern.permute.xlu0 3
    %1273 = vperm.xlu0 %1272, %v631
    %v1274 = vpop.permute.xlu0 %1273
    %1276 = vset.pattern.permute.xlu0 3
    %1277 = vperm.xlu0 %1276, %v632
    %v1278 = vpop.permute.xlu0 %1277
    %v1280 = vmul.f32 %v1250, %v1210
    %v1281 = vmul.f32 %v1254, %v1215
    %v1282 = vmul.f32 %v1258, %v1220
    %v1283 = vmul.f32 %v1262, %v1225
    %v1284 = vmul.f32 %v1266, %v1230
    %v1285 = vmul.f32 %v1270, %v1235
    %v1286 = vmul.f32 %v1274, %v1240
    %v1287 = vmul.f32 %v1278, %v1245
    %v1288 = vadd.f32 %v1130, %v1280
    %v1289 = vadd.f32 %v1131, %v1281
    %v1290 = vadd.f32 %v1132, %v1282
    %v1291 = vadd.f32 %v1133, %v1283
    %v1292 = vadd.f32 %v1134, %v1284
    %v1293 = vadd.f32 %v1135, %v1285
    %v1294 = vadd.f32 %v1136, %v1286
    %v1295 = vadd.f32 %v1137, %v1287
    %s1296 = scalar_lea.vmem %s13, 128
    %v1297 = vld [vmem:[%s1296] sm:$0xff]
    %v1298 = vld [vmem:[%s1296 + $0x8] sm:$0xff]
    %v1299 = vld [vmem:[%s1296 + $0x10] sm:$0xff]
    %v1300 = vld [vmem:[%s1296 + $0x18] sm:$0xff]
    %1301 = vmatprep.subr.mxu0 0.0
    %1302 = vmatpush1.msra.mxu0 0.0
    %1303 = vmatprep.subr.mxu0 0.0
    %1304 = vmatpush1.msra.mxu0 0.0
    %1305 = vmatprep.subr.mxu0 0.0
    %1306 = vmatpush1.msra.mxu0 0.0
    %1307 = vmatprep.subr.mxu0 0.0
    %1308 = vmatpush1.msra.mxu0 0.0
    %1309 = vmatprep.subr.mxu0 0.0
    %1310 = vmatpush1.msra.mxu0 0.0
    %1311 = vmatprep.subr.mxu0 0.0
    %1312 = vmatpush1.msra.mxu0 0.0
    %1313 = vmatprep.subr.mxu0 0.0
    %1314 = vmatpush1.msra.mxu0 0.0
    %1315 = vmatprep.subr.mxu0 0.0
    %1316 = vmatpush1.msra.mxu0 0.0
    %1317 = vmatprep.subr.mxu0 0.0
    %1318 = vmatpush1.msra.mxu0 0.0
    %1319 = vmatprep.subr.mxu0 0.0
    %1320 = vmatpush1.msra.mxu0 0.0
    %1321 = vmatprep.subr.mxu0 0.0
    %1322 = vmatpush1.msra.mxu0 0.0
    %1323 = vmatprep.subr.mxu0 0.0
    %1324 = vmatpush1.msra.mxu0 0.0
    %1325 = vmatprep.subr.mxu0 0.0
    %1326 = vmatpush1.msra.mxu0 %v1300
    %1327 = vmatprep.subr.mxu0 0.0
    %1328 = vmatpush1.msra.mxu0 %v1299
    %1329 = vmatprep.subr.mxu0 0.0
    %1330 = vmatpush1.msra.mxu0 %v1298
    %1331 = vmatprep.subr.mxu0 0.0
    %1332 = vmatpush1.msra.mxu0 %v1297
    %1333 = vmatprep.subr.mxu0 0.0
    %1334 = vmatpush2.msra.mxu0 0.0
    %1335 = vmatprep.subr.mxu0 0.0
    %1336 = vmatpush2.msra.mxu0 0.0
    %1337 = vmatprep.subr.mxu0 0.0
    %1338 = vmatpush2.msra.mxu0 0.0
    %1339 = vmatprep.subr.mxu0 0.0
    %1340 = vmatpush2.msra.mxu0 0.0
    %1341 = vmatprep.subr.mxu0 0.0
    %1342 = vmatpush2.msra.mxu0 0.0
    %1343 = vmatprep.subr.mxu0 0.0
    %1344 = vmatpush2.msra.mxu0 0.0
    %1345 = vmatprep.subr.mxu0 0.0
    %1346 = vmatpush2.msra.mxu0 0.0
    %1347 = vmatprep.subr.mxu0 0.0
    %1348 = vmatpush2.msra.mxu0 0.0
    %1349 = vmatprep.subr.mxu0 0.0
    %1350 = vmatpush2.msra.mxu0 0.0
    %1351 = vmatprep.subr.mxu0 0.0
    %1352 = vmatpush2.msra.mxu0 0.0
    %1353 = vmatprep.subr.mxu0 0.0
    %1354 = vmatpush2.msra.mxu0 0.0
    %1355 = vmatprep.subr.mxu0 0.0
    %1356 = vmatpush2.msra.mxu0 0.0
    %1357 = vmatprep.subr.mxu0 0.0
    %1358 = vmatpush2.msra.mxu0 0.0
    %1359 = vmatprep.subr.mxu0 0.0
    %1360 = vmatpush2.msra.mxu0 0.0
    %1361 = vmatprep.subr.mxu0 0.0
    %1362 = vmatpush2.msra.mxu0 0.0
    %1363 = vmatprep.subr.mxu0 0.0
    %1364 = vmatpush2.msra.mxu0 0.0
    %1365 = vmatprep.mubr.f32.mxu0 0.0
    %1366 = vmatmul.mubr.f32.gmra.mxu0 %v638
    %v1367 = vpop.f32.mrf.mxu0
    %v1368 = vadd.f32 0.0, %v1367
    %v1369 = vpop.f32.mrf.mxu0
    %1370 = vmatprep.mubr.f32.mxu0 0.0
    %1371 = vmatmul.mubr.f32.gmra.mxu0 %v641
    %v1372 = vpop.f32.mrf.mxu0
    %v1373 = vadd.f32 0.0, %v1372
    %v1374 = vpop.f32.mrf.mxu0
    %1375 = vmatprep.mubr.f32.mxu0 0.0
    %1376 = vmatmul.mubr.f32.gmra.mxu0 %v644
    %v1377 = vpop.f32.mrf.mxu0
    %v1378 = vadd.f32 0.0, %v1377
    %v1379 = vpop.f32.mrf.mxu0
    %1380 = vmatprep.mubr.f32.mxu0 0.0
    %1381 = vmatmul.mubr.f32.gmra.mxu0 %v647
    %v1382 = vpop.f32.mrf.mxu0
    %v1383 = vadd.f32 0.0, %v1382
    %v1384 = vpop.f32.mrf.mxu0
    %1385 = vmatprep.mubr.f32.mxu0 0.0
    %1386 = vmatmul.mubr.f32.gmra.mxu0 %v650
    %v1387 = vpop.f32.mrf.mxu0
    %v1388 = vadd.f32 0.0, %v1387
    %v1389 = vpop.f32.mrf.mxu0
    %1390 = vmatprep.mubr.f32.mxu0 0.0
    %1391 = vmatmul.mubr.f32.gmra.mxu0 %v653
    %v1392 = vpop.f32.mrf.mxu0
    %v1393 = vadd.f32 0.0, %v1392
    %v1394 = vpop.f32.mrf.mxu0
    %1395 = vmatprep.mubr.f32.mxu0 0.0
    %1396 = vmatmul.mubr.f32.gmra.mxu0 %v656
    %v1397 = vpop.f32.mrf.mxu0
    %v1398 = vadd.f32 0.0, %v1397
    %v1399 = vpop.f32.mrf.mxu0
    %1400 = vmatprep.mubr.f32.mxu0 0.0
    %1401 = vmatmul.mubr.f32.gmra.mxu0 %v659
    %v1402 = vpop.f32.mrf.mxu0
    %v1403 = vadd.f32 0.0, %v1402
    %v1404 = vpop.f32.mrf.mxu0
    %1405 = vdwg.mxu0
    %1406 = vset.pattern.permute.xlu0 4
    %1407 = vperm.xlu0 %1406, %v625
    %v1408 = vpop.permute.xlu0 %1407
    %1410 = vset.pattern.permute.xlu0 4
    %1411 = vperm.xlu0 %1410, %v626
    %v1412 = vpop.permute.xlu0 %1411
    %1414 = vset.pattern.permute.xlu0 4
    %1415 = vperm.xlu0 %1414, %v627
    %v1416 = vpop.permute.xlu0 %1415
    %1418 = vset.pattern.permute.xlu0 4
    %1419 = vperm.xlu0 %1418, %v628
    %v1420 = vpop.permute.xlu0 %1419
    %1422 = vset.pattern.permute.xlu0 4
    %1423 = vperm.xlu0 %1422, %v629
    %v1424 = vpop.permute.xlu0 %1423
    %1426 = vset.pattern.permute.xlu0 4
    %1427 = vperm.xlu0 %1426, %v630
    %v1428 = vpop.permute.xlu0 %1427
    %1430 = vset.pattern.permute.xlu0 4
    %1431 = vperm.xlu0 %1430, %v631
    %v1432 = vpop.permute.xlu0 %1431
    %1434 = vset.pattern.permute.xlu0 4
    %1435 = vperm.xlu0 %1434, %v632
    %v1436 = vpop.permute.xlu0 %1435
    %v1438 = vmul.f32 %v1408, %v1368
    %v1439 = vmul.f32 %v1412, %v1373
    %v1440 = vmul.f32 %v1416, %v1378
    %v1441 = vmul.f32 %v1420, %v1383
    %v1442 = vmul.f32 %v1424, %v1388
    %v1443 = vmul.f32 %v1428, %v1393
    %v1444 = vmul.f32 %v1432, %v1398
    %v1445 = vmul.f32 %v1436, %v1403
    %v1446 = vadd.f32 %v1288, %v1438
    %v1447 = vadd.f32 %v1289, %v1439
    %v1448 = vadd.f32 %v1290, %v1440
    %v1449 = vadd.f32 %v1291, %v1441
    %v1450 = vadd.f32 %v1292, %v1442
    %v1451 = vadd.f32 %v1293, %v1443
    %v1452 = vadd.f32 %v1294, %v1444
    %v1453 = vadd.f32 %v1295, %v1445
    %s1454 = scalar_lea.vmem %s13, 160
    %v1455 = vld [vmem:[%s1454] sm:$0xff]
    %v1456 = vld [vmem:[%s1454 + $0x8] sm:$0xff]
    %v1457 = vld [vmem:[%s1454 + $0x10] sm:$0xff]
    %v1458 = vld [vmem:[%s1454 + $0x18] sm:$0xff]
    %1459 = vmatprep.subr.mxu0 0.0
    %1460 = vmatpush1.msra.mxu0 0.0
    %1461 = vmatprep.subr.mxu0 0.0
    %1462 = vmatpush1.msra.mxu0 0.0
    %1463 = vmatprep.subr.mxu0 0.0
    %1464 = vmatpush1.msra.mxu0 0.0
    %1465 = vmatprep.subr.mxu0 0.0
    %1466 = vmatpush1.msra.mxu0 0.0
    %1467 = vmatprep.subr.mxu0 0.0
    %1468 = vmatpush1.msra.mxu0 0.0
    %1469 = vmatprep.subr.mxu0 0.0
    %1470 = vmatpush1.msra.mxu0 0.0
    %1471 = vmatprep.subr.mxu0 0.0
    %1472 = vmatpush1.msra.mxu0 0.0
    %1473 = vmatprep.subr.mxu0 0.0
    %1474 = vmatpush1.msra.mxu0 0.0
    %1475 = vmatprep.subr.mxu0 0.0
    %1476 = vmatpush1.msra.mxu0 0.0
    %1477 = vmatprep.subr.mxu0 0.0
    %1478 = vmatpush1.msra.mxu0 0.0
    %1479 = vmatprep.subr.mxu0 0.0
    %1480 = vmatpush1.msra.mxu0 0.0
    %1481 = vmatprep.subr.mxu0 0.0
    %1482 = vmatpush1.msra.mxu0 0.0
    %1483 = vmatprep.subr.mxu0 0.0
    %1484 = vmatpush1.msra.mxu0 %v1458
    %1485 = vmatprep.subr.mxu0 0.0
    %1486 = vmatpush1.msra.mxu0 %v1457
    %1487 = vmatprep.subr.mxu0 0.0
    %1488 = vmatpush1.msra.mxu0 %v1456
    %1489 = vmatprep.subr.mxu0 0.0
    %1490 = vmatpush1.msra.mxu0 %v1455
    %1491 = vmatprep.subr.mxu0 0.0
    %1492 = vmatpush2.msra.mxu0 0.0
    %1493 = vmatprep.subr.mxu0 0.0
    %1494 = vmatpush2.msra.mxu0 0.0
    %1495 = vmatprep.subr.mxu0 0.0
    %1496 = vmatpush2.msra.mxu0 0.0
    %1497 = vmatprep.subr.mxu0 0.0
    %1498 = vmatpush2.msra.mxu0 0.0
    %1499 = vmatprep.subr.mxu0 0.0
    %1500 = vmatpush2.msra.mxu0 0.0
    %1501 = vmatprep.subr.mxu0 0.0
    %1502 = vmatpush2.msra.mxu0 0.0
    %1503 = vmatprep.subr.mxu0 0.0
    %1504 = vmatpush2.msra.mxu0 0.0
    %1505 = vmatprep.subr.mxu0 0.0
    %1506 = vmatpush2.msra.mxu0 0.0
    %1507 = vmatprep.subr.mxu0 0.0
    %1508 = vmatpush2.msra.mxu0 0.0
    %1509 = vmatprep.subr.mxu0 0.0
    %1510 = vmatpush2.msra.mxu0 0.0
    %1511 = vmatprep.subr.mxu0 0.0
    %1512 = vmatpush2.msra.mxu0 0.0
    %1513 = vmatprep.subr.mxu0 0.0
    %1514 = vmatpush2.msra.mxu0 0.0
    %1515 = vmatprep.subr.mxu0 0.0
    %1516 = vmatpush2.msra.mxu0 0.0
    %1517 = vmatprep.subr.mxu0 0.0
    %1518 = vmatpush2.msra.mxu0 0.0
    %1519 = vmatprep.subr.mxu0 0.0
    %1520 = vmatpush2.msra.mxu0 0.0
    %1521 = vmatprep.subr.mxu0 0.0
    %1522 = vmatpush2.msra.mxu0 0.0
    %1523 = vmatprep.mubr.f32.mxu0 0.0
    %1524 = vmatmul.mubr.f32.gmra.mxu0 %v638
    %v1525 = vpop.f32.mrf.mxu0
    %v1526 = vadd.f32 0.0, %v1525
    %v1527 = vpop.f32.mrf.mxu0
    %1528 = vmatprep.mubr.f32.mxu0 0.0
    %1529 = vmatmul.mubr.f32.gmra.mxu0 %v641
    %v1530 = vpop.f32.mrf.mxu0
    %v1531 = vadd.f32 0.0, %v1530
    %v1532 = vpop.f32.mrf.mxu0
    %1533 = vmatprep.mubr.f32.mxu0 0.0
    %1534 = vmatmul.mubr.f32.gmra.mxu0 %v644
    %v1535 = vpop.f32.mrf.mxu0
    %v1536 = vadd.f32 0.0, %v1535
    %v1537 = vpop.f32.mrf.mxu0
    %1538 = vmatprep.mubr.f32.mxu0 0.0
    %1539 = vmatmul.mubr.f32.gmra.mxu0 %v647
    %v1540 = vpop.f32.mrf.mxu0
    %v1541 = vadd.f32 0.0, %v1540
    %v1542 = vpop.f32.mrf.mxu0
    %1543 = vmatprep.mubr.f32.mxu0 0.0
    %1544 = vmatmul.mubr.f32.gmra.mxu0 %v650
    %v1545 = vpop.f32.mrf.mxu0
    %v1546 = vadd.f32 0.0, %v1545
    %v1547 = vpop.f32.mrf.mxu0
    %1548 = vmatprep.mubr.f32.mxu0 0.0
    %1549 = vmatmul.mubr.f32.gmra.mxu0 %v653
    %v1550 = vpop.f32.mrf.mxu0
    %v1551 = vadd.f32 0.0, %v1550
    %v1552 = vpop.f32.mrf.mxu0
    %1553 = vmatprep.mubr.f32.mxu0 0.0
    %1554 = vmatmul.mubr.f32.gmra.mxu0 %v656
    %v1555 = vpop.f32.mrf.mxu0
    %v1556 = vadd.f32 0.0, %v1555
    %v1557 = vpop.f32.mrf.mxu0
    %1558 = vmatprep.mubr.f32.mxu0 0.0
    %1559 = vmatmul.mubr.f32.gmra.mxu0 %v659
    %v1560 = vpop.f32.mrf.mxu0
    %v1561 = vadd.f32 0.0, %v1560
    %v1562 = vpop.f32.mrf.mxu0
    %1563 = vdwg.mxu0
    %1564 = vset.pattern.permute.xlu0 5
    %1565 = vperm.xlu0 %1564, %v625
    %v1566 = vpop.permute.xlu0 %1565
    %1568 = vset.pattern.permute.xlu0 5
    %1569 = vperm.xlu0 %1568, %v626
    %v1570 = vpop.permute.xlu0 %1569
    %1572 = vset.pattern.permute.xlu0 5
    %1573 = vperm.xlu0 %1572, %v627
    %v1574 = vpop.permute.xlu0 %1573
    %1576 = vset.pattern.permute.xlu0 5
    %1577 = vperm.xlu0 %1576, %v628
    %v1578 = vpop.permute.xlu0 %1577
    %1580 = vset.pattern.permute.xlu0 5
    %1581 = vperm.xlu0 %1580, %v629
    %v1582 = vpop.permute.xlu0 %1581
    %1584 = vset.pattern.permute.xlu0 5
    %1585 = vperm.xlu0 %1584, %v630
    %v1586 = vpop.permute.xlu0 %1585
    %1588 = vset.pattern.permute.xlu0 5
    %1589 = vperm.xlu0 %1588, %v631
    %v1590 = vpop.permute.xlu0 %1589
    %1592 = vset.pattern.permute.xlu0 5
    %1593 = vperm.xlu0 %1592, %v632
    %v1594 = vpop.permute.xlu0 %1593
    %v1596 = vmul.f32 %v1566, %v1526
    %v1597 = vmul.f32 %v1570, %v1531
    %v1598 = vmul.f32 %v1574, %v1536
    %v1599 = vmul.f32 %v1578, %v1541
    %v1600 = vmul.f32 %v1582, %v1546
    %v1601 = vmul.f32 %v1586, %v1551
    %v1602 = vmul.f32 %v1590, %v1556
    %v1603 = vmul.f32 %v1594, %v1561
    %v1604 = vadd.f32 %v1446, %v1596
    %v1605 = vadd.f32 %v1447, %v1597
    %v1606 = vadd.f32 %v1448, %v1598
    %v1607 = vadd.f32 %v1449, %v1599
    %v1608 = vadd.f32 %v1450, %v1600
    %v1609 = vadd.f32 %v1451, %v1601
    %v1610 = vadd.f32 %v1452, %v1602
    %v1611 = vadd.f32 %v1453, %v1603
    %s1612 = scalar_lea.vmem %s13, 192
    %v1613 = vld [vmem:[%s1612] sm:$0xff]
    %v1614 = vld [vmem:[%s1612 + $0x8] sm:$0xff]
    %v1615 = vld [vmem:[%s1612 + $0x10] sm:$0xff]
    %v1616 = vld [vmem:[%s1612 + $0x18] sm:$0xff]
    %1617 = vmatprep.subr.mxu0 0.0
    %1618 = vmatpush1.msra.mxu0 0.0
    %1619 = vmatprep.subr.mxu0 0.0
    %1620 = vmatpush1.msra.mxu0 0.0
    %1621 = vmatprep.subr.mxu0 0.0
    %1622 = vmatpush1.msra.mxu0 0.0
    %1623 = vmatprep.subr.mxu0 0.0
    %1624 = vmatpush1.msra.mxu0 0.0
    %1625 = vmatprep.subr.mxu0 0.0
    %1626 = vmatpush1.msra.mxu0 0.0
    %1627 = vmatprep.subr.mxu0 0.0
    %1628 = vmatpush1.msra.mxu0 0.0
    %1629 = vmatprep.subr.mxu0 0.0
    %1630 = vmatpush1.msra.mxu0 0.0
    %1631 = vmatprep.subr.mxu0 0.0
    %1632 = vmatpush1.msra.mxu0 0.0
    %1633 = vmatprep.subr.mxu0 0.0
    %1634 = vmatpush1.msra.mxu0 0.0
    %1635 = vmatprep.subr.mxu0 0.0
    %1636 = vmatpush1.msra.mxu0 0.0
    %1637 = vmatprep.subr.mxu0 0.0
    %1638 = vmatpush1.msra.mxu0 0.0
    %1639 = vmatprep.subr.mxu0 0.0
    %1640 = vmatpush1.msra.mxu0 0.0
    %1641 = vmatprep.subr.mxu0 0.0
    %1642 = vmatpush1.msra.mxu0 %v1616
    %1643 = vmatprep.subr.mxu0 0.0
    %1644 = vmatpush1.msra.mxu0 %v1615
    %1645 = vmatprep.subr.mxu0 0.0
    %1646 = vmatpush1.msra.mxu0 %v1614
    %1647 = vmatprep.subr.mxu0 0.0
    %1648 = vmatpush1.msra.mxu0 %v1613
    %1649 = vmatprep.subr.mxu0 0.0
    %1650 = vmatpush2.msra.mxu0 0.0
    %1651 = vmatprep.subr.mxu0 0.0
    %1652 = vmatpush2.msra.mxu0 0.0
    %1653 = vmatprep.subr.mxu0 0.0
    %1654 = vmatpush2.msra.mxu0 0.0
    %1655 = vmatprep.subr.mxu0 0.0
    %1656 = vmatpush2.msra.mxu0 0.0
    %1657 = vmatprep.subr.mxu0 0.0
    %1658 = vmatpush2.msra.mxu0 0.0
    %1659 = vmatprep.subr.mxu0 0.0
    %1660 = vmatpush2.msra.mxu0 0.0
    %1661 = vmatprep.subr.mxu0 0.0
    %1662 = vmatpush2.msra.mxu0 0.0
    %1663 = vmatprep.subr.mxu0 0.0
    %1664 = vmatpush2.msra.mxu0 0.0
    %1665 = vmatprep.subr.mxu0 0.0
    %1666 = vmatpush2.msra.mxu0 0.0
    %1667 = vmatprep.subr.mxu0 0.0
    %1668 = vmatpush2.msra.mxu0 0.0
    %1669 = vmatprep.subr.mxu0 0.0
    %1670 = vmatpush2.msra.mxu0 0.0
    %1671 = vmatprep.subr.mxu0 0.0
    %1672 = vmatpush2.msra.mxu0 0.0
    %1673 = vmatprep.subr.mxu0 0.0
    %1674 = vmatpush2.msra.mxu0 0.0
    %1675 = vmatprep.subr.mxu0 0.0
    %1676 = vmatpush2.msra.mxu0 0.0
    %1677 = vmatprep.subr.mxu0 0.0
    %1678 = vmatpush2.msra.mxu0 0.0
    %1679 = vmatprep.subr.mxu0 0.0
    %1680 = vmatpush2.msra.mxu0 0.0
    %1681 = vmatprep.mubr.f32.mxu0 0.0
    %1682 = vmatmul.mubr.f32.gmra.mxu0 %v638
    %v1683 = vpop.f32.mrf.mxu0
    %v1684 = vadd.f32 0.0, %v1683
    %v1685 = vpop.f32.mrf.mxu0
    %1686 = vmatprep.mubr.f32.mxu0 0.0
    %1687 = vmatmul.mubr.f32.gmra.mxu0 %v641
    %v1688 = vpop.f32.mrf.mxu0
    %v1689 = vadd.f32 0.0, %v1688
    %v1690 = vpop.f32.mrf.mxu0
    %1691 = vmatprep.mubr.f32.mxu0 0.0
    %1692 = vmatmul.mubr.f32.gmra.mxu0 %v644
    %v1693 = vpop.f32.mrf.mxu0
    %v1694 = vadd.f32 0.0, %v1693
    %v1695 = vpop.f32.mrf.mxu0
    %1696 = vmatprep.mubr.f32.mxu0 0.0
    %1697 = vmatmul.mubr.f32.gmra.mxu0 %v647
    %v1698 = vpop.f32.mrf.mxu0
    %v1699 = vadd.f32 0.0, %v1698
    %v1700 = vpop.f32.mrf.mxu0
    %1701 = vmatprep.mubr.f32.mxu0 0.0
    %1702 = vmatmul.mubr.f32.gmra.mxu0 %v650
    %v1703 = vpop.f32.mrf.mxu0
    %v1704 = vadd.f32 0.0, %v1703
    %v1705 = vpop.f32.mrf.mxu0
    %1706 = vmatprep.mubr.f32.mxu0 0.0
    %1707 = vmatmul.mubr.f32.gmra.mxu0 %v653
    %v1708 = vpop.f32.mrf.mxu0
    %v1709 = vadd.f32 0.0, %v1708
    %v1710 = vpop.f32.mrf.mxu0
    %1711 = vmatprep.mubr.f32.mxu0 0.0
    %1712 = vmatmul.mubr.f32.gmra.mxu0 %v656
    %v1713 = vpop.f32.mrf.mxu0
    %v1714 = vadd.f32 0.0, %v1713
    %v1715 = vpop.f32.mrf.mxu0
    %1716 = vmatprep.mubr.f32.mxu0 0.0
    %1717 = vmatmul.mubr.f32.gmra.mxu0 %v659
    %v1718 = vpop.f32.mrf.mxu0
    %v1719 = vadd.f32 0.0, %v1718
    %v1720 = vpop.f32.mrf.mxu0
    %1721 = vdwg.mxu0
    %1722 = vset.pattern.permute.xlu0 6
    %1723 = vperm.xlu0 %1722, %v625
    %v1724 = vpop.permute.xlu0 %1723
    %1726 = vset.pattern.permute.xlu0 6
    %1727 = vperm.xlu0 %1726, %v626
    %v1728 = vpop.permute.xlu0 %1727
    %1730 = vset.pattern.permute.xlu0 6
    %1731 = vperm.xlu0 %1730, %v627
    %v1732 = vpop.permute.xlu0 %1731
    %1734 = vset.pattern.permute.xlu0 6
    %1735 = vperm.xlu0 %1734, %v628
    %v1736 = vpop.permute.xlu0 %1735
    %1738 = vset.pattern.permute.xlu0 6
    %1739 = vperm.xlu0 %1738, %v629
    %v1740 = vpop.permute.xlu0 %1739
    %1742 = vset.pattern.permute.xlu0 6
    %1743 = vperm.xlu0 %1742, %v630
    %v1744 = vpop.permute.xlu0 %1743
    %1746 = vset.pattern.permute.xlu0 6
    %1747 = vperm.xlu0 %1746, %v631
    %v1748 = vpop.permute.xlu0 %1747
    %1750 = vset.pattern.permute.xlu0 6
    %1751 = vperm.xlu0 %1750, %v632
    %v1752 = vpop.permute.xlu0 %1751
    %v1754 = vmul.f32 %v1724, %v1684
    %v1755 = vmul.f32 %v1728, %v1689
    %v1756 = vmul.f32 %v1732, %v1694
    %v1757 = vmul.f32 %v1736, %v1699
    %v1758 = vmul.f32 %v1740, %v1704
    %v1759 = vmul.f32 %v1744, %v1709
    %v1760 = vmul.f32 %v1748, %v1714
    %v1761 = vmul.f32 %v1752, %v1719
    %v1762 = vadd.f32 %v1604, %v1754
    %v1763 = vadd.f32 %v1605, %v1755
    %v1764 = vadd.f32 %v1606, %v1756
    %v1765 = vadd.f32 %v1607, %v1757
    %v1766 = vadd.f32 %v1608, %v1758
    %v1767 = vadd.f32 %v1609, %v1759
    %v1768 = vadd.f32 %v1610, %v1760
    %v1769 = vadd.f32 %v1611, %v1761
    %s1770 = scalar_lea.vmem %s13, 224
    %v1771 = vld [vmem:[%s1770] sm:$0xff]
    %v1772 = vld [vmem:[%s1770 + $0x8] sm:$0xff]
    %v1773 = vld [vmem:[%s1770 + $0x10] sm:$0xff]
    %v1774 = vld [vmem:[%s1770 + $0x18] sm:$0xff]
    %1775 = vmatprep.subr.mxu0 0.0
    %1776 = vmatpush1.msra.mxu0 0.0
    %1777 = vmatprep.subr.mxu0 0.0
    %1778 = vmatpush1.msra.mxu0 0.0
    %1779 = vmatprep.subr.mxu0 0.0
    %1780 = vmatpush1.msra.mxu0 0.0
    %1781 = vmatprep.subr.mxu0 0.0
    %1782 = vmatpush1.msra.mxu0 0.0
    %1783 = vmatprep.subr.mxu0 0.0
    %1784 = vmatpush1.msra.mxu0 0.0
    %1785 = vmatprep.subr.mxu0 0.0
    %1786 = vmatpush1.msra.mxu0 0.0
    %1787 = vmatprep.subr.mxu0 0.0
    %1788 = vmatpush1.msra.mxu0 0.0
    %1789 = vmatprep.subr.mxu0 0.0
    %1790 = vmatpush1.msra.mxu0 0.0
    %1791 = vmatprep.subr.mxu0 0.0
    %1792 = vmatpush1.msra.mxu0 0.0
    %1793 = vmatprep.subr.mxu0 0.0
    %1794 = vmatpush1.msra.mxu0 0.0
    %1795 = vmatprep.subr.mxu0 0.0
    %1796 = vmatpush1.msra.mxu0 0.0
    %1797 = vmatprep.subr.mxu0 0.0
    %1798 = vmatpush1.msra.mxu0 0.0
    %1799 = vmatprep.subr.mxu0 0.0
    %1800 = vmatpush1.msra.mxu0 %v1774
    %1801 = vmatprep.subr.mxu0 0.0
    %1802 = vmatpush1.msra.mxu0 %v1773
    %1803 = vmatprep.subr.mxu0 0.0
    %1804 = vmatpush1.msra.mxu0 %v1772
    %1805 = vmatprep.subr.mxu0 0.0
    %1806 = vmatpush1.msra.mxu0 %v1771
    %1807 = vmatprep.subr.mxu0 0.0
    %1808 = vmatpush2.msra.mxu0 0.0
    %1809 = vmatprep.subr.mxu0 0.0
    %1810 = vmatpush2.msra.mxu0 0.0
    %1811 = vmatprep.subr.mxu0 0.0
    %1812 = vmatpush2.msra.mxu0 0.0
    %1813 = vmatprep.subr.mxu0 0.0
    %1814 = vmatpush2.msra.mxu0 0.0
    %1815 = vmatprep.subr.mxu0 0.0
    %1816 = vmatpush2.msra.mxu0 0.0
    %1817 = vmatprep.subr.mxu0 0.0
    %1818 = vmatpush2.msra.mxu0 0.0
    %1819 = vmatprep.subr.mxu0 0.0
    %1820 = vmatpush2.msra.mxu0 0.0
    %1821 = vmatprep.subr.mxu0 0.0
    %1822 = vmatpush2.msra.mxu0 0.0
    %1823 = vmatprep.subr.mxu0 0.0
    %1824 = vmatpush2.msra.mxu0 0.0
    %1825 = vmatprep.subr.mxu0 0.0
    %1826 = vmatpush2.msra.mxu0 0.0
    %1827 = vmatprep.subr.mxu0 0.0
    %1828 = vmatpush2.msra.mxu0 0.0
    %1829 = vmatprep.subr.mxu0 0.0
    %1830 = vmatpush2.msra.mxu0 0.0
    %1831 = vmatprep.subr.mxu0 0.0
    %1832 = vmatpush2.msra.mxu0 0.0
    %1833 = vmatprep.subr.mxu0 0.0
    %1834 = vmatpush2.msra.mxu0 0.0
    %1835 = vmatprep.subr.mxu0 0.0
    %1836 = vmatpush2.msra.mxu0 0.0
    %1837 = vmatprep.subr.mxu0 0.0
    %1838 = vmatpush2.msra.mxu0 0.0
    %1839 = vmatprep.mubr.f32.mxu0 0.0
    %1840 = vmatmul.mubr.f32.gmra.mxu0 %v638
    %v1841 = vpop.f32.mrf.mxu0
    %v1842 = vadd.f32 0.0, %v1841
    %v1843 = vpop.f32.mrf.mxu0
    %1844 = vmatprep.mubr.f32.mxu0 0.0
    %1845 = vmatmul.mubr.f32.gmra.mxu0 %v641
    %v1846 = vpop.f32.mrf.mxu0
    %v1847 = vadd.f32 0.0, %v1846
    %v1848 = vpop.f32.mrf.mxu0
    %1849 = vmatprep.mubr.f32.mxu0 0.0
    %1850 = vmatmul.mubr.f32.gmra.mxu0 %v644
    %v1851 = vpop.f32.mrf.mxu0
    %v1852 = vadd.f32 0.0, %v1851
    %v1853 = vpop.f32.mrf.mxu0
    %1854 = vmatprep.mubr.f32.mxu0 0.0
    %1855 = vmatmul.mubr.f32.gmra.mxu0 %v647
    %v1856 = vpop.f32.mrf.mxu0
    %v1857 = vadd.f32 0.0, %v1856
    %v1858 = vpop.f32.mrf.mxu0
    %1859 = vmatprep.mubr.f32.mxu0 0.0
    %1860 = vmatmul.mubr.f32.gmra.mxu0 %v650
    %v1861 = vpop.f32.mrf.mxu0
    %v1862 = vadd.f32 0.0, %v1861
    %v1863 = vpop.f32.mrf.mxu0
    %1864 = vmatprep.mubr.f32.mxu0 0.0
    %1865 = vmatmul.mubr.f32.gmra.mxu0 %v653
    %v1866 = vpop.f32.mrf.mxu0
    %v1867 = vadd.f32 0.0, %v1866
    %v1868 = vpop.f32.mrf.mxu0
    %1869 = vmatprep.mubr.f32.mxu0 0.0
    %1870 = vmatmul.mubr.f32.gmra.mxu0 %v656
    %v1871 = vpop.f32.mrf.mxu0
    %v1872 = vadd.f32 0.0, %v1871
    %v1873 = vpop.f32.mrf.mxu0
    %1874 = vmatprep.mubr.f32.mxu0 0.0
    %1875 = vmatmul.mubr.f32.gmra.mxu0 %v659
    %v1876 = vpop.f32.mrf.mxu0
    %v1877 = vadd.f32 0.0, %v1876
    %v1878 = vpop.f32.mrf.mxu0
    %1879 = vdwg.mxu0
    %1880 = vset.pattern.permute.xlu0 7
    %1881 = vperm.xlu0 %1880, %v625
    %v1882 = vpop.permute.xlu0 %1881
    %1884 = vset.pattern.permute.xlu0 7
    %1885 = vperm.xlu0 %1884, %v626
    %v1886 = vpop.permute.xlu0 %1885
    %1888 = vset.pattern.permute.xlu0 7
    %1889 = vperm.xlu0 %1888, %v627
    %v1890 = vpop.permute.xlu0 %1889
    %1892 = vset.pattern.permute.xlu0 7
    %1893 = vperm.xlu0 %1892, %v628
    %v1894 = vpop.permute.xlu0 %1893
    %1896 = vset.pattern.permute.xlu0 7
    %1897 = vperm.xlu0 %1896, %v629
    %v1898 = vpop.permute.xlu0 %1897
    %1900 = vset.pattern.permute.xlu0 7
    %1901 = vperm.xlu0 %1900, %v630
    %v1902 = vpop.permute.xlu0 %1901
    %1904 = vset.pattern.permute.xlu0 7
    %1905 = vperm.xlu0 %1904, %v631
    %v1906 = vpop.permute.xlu0 %1905
    %1908 = vset.pattern.permute.xlu0 7
    %1909 = vperm.xlu0 %1908, %v632
    %v1910 = vpop.permute.xlu0 %1909
    %v1912 = vmul.f32 %v1882, %v1842
    %v1913 = vmul.f32 %v1886, %v1847
    %v1914 = vmul.f32 %v1890, %v1852
    %v1915 = vmul.f32 %v1894, %v1857
    %v1916 = vmul.f32 %v1898, %v1862
    %v1917 = vmul.f32 %v1902, %v1867
    %v1918 = vmul.f32 %v1906, %v1872
    %v1919 = vmul.f32 %v1910, %v1877
    %v1920 = vadd.f32 %v1762, %v1912
    %v1921 = vadd.f32 %v1763, %v1913
    %v1922 = vadd.f32 %v1764, %v1914
    %v1923 = vadd.f32 %v1765, %v1915
    %v1924 = vadd.f32 %v1766, %v1916
    %v1925 = vadd.f32 %v1767, %v1917
    %v1926 = vadd.f32 %v1768, %v1918
    %v1927 = vadd.f32 %v1769, %v1919
    %s1928 = scalar_lea.vmem %s13, 256
    %v1929 = vld [vmem:[%s1928] sm:$0xff]
    %v1930 = vld [vmem:[%s1928 + $0x8] sm:$0xff]
    %v1931 = vld [vmem:[%s1928 + $0x10] sm:$0xff]
    %v1932 = vld [vmem:[%s1928 + $0x18] sm:$0xff]
    %1933 = vmatprep.subr.mxu0 0.0
    %1934 = vmatpush1.msra.mxu0 0.0
    %1935 = vmatprep.subr.mxu0 0.0
    %1936 = vmatpush1.msra.mxu0 0.0
    %1937 = vmatprep.subr.mxu0 0.0
    %1938 = vmatpush1.msra.mxu0 0.0
    %1939 = vmatprep.subr.mxu0 0.0
    %1940 = vmatpush1.msra.mxu0 0.0
    %1941 = vmatprep.subr.mxu0 0.0
    %1942 = vmatpush1.msra.mxu0 0.0
    %1943 = vmatprep.subr.mxu0 0.0
    %1944 = vmatpush1.msra.mxu0 0.0
    %1945 = vmatprep.subr.mxu0 0.0
    %1946 = vmatpush1.msra.mxu0 0.0
    %1947 = vmatprep.subr.mxu0 0.0
    %1948 = vmatpush1.msra.mxu0 0.0
    %1949 = vmatprep.subr.mxu0 0.0
    %1950 = vmatpush1.msra.mxu0 0.0
    %1951 = vmatprep.subr.mxu0 0.0
    %1952 = vmatpush1.msra.mxu0 0.0
    %1953 = vmatprep.subr.mxu0 0.0
    %1954 = vmatpush1.msra.mxu0 0.0
    %1955 = vmatprep.subr.mxu0 0.0
    %1956 = vmatpush1.msra.mxu0 0.0
    %1957 = vmatprep.subr.mxu0 0.0
    %1958 = vmatpush1.msra.mxu0 %v1932
    %1959 = vmatprep.subr.mxu0 0.0
    %1960 = vmatpush1.msra.mxu0 %v1931
    %1961 = vmatprep.subr.mxu0 0.0
    %1962 = vmatpush1.msra.mxu0 %v1930
    %1963 = vmatprep.subr.mxu0 0.0
    %1964 = vmatpush1.msra.mxu0 %v1929
    %1965 = vmatprep.subr.mxu0 0.0
    %1966 = vmatpush2.msra.mxu0 0.0
    %1967 = vmatprep.subr.mxu0 0.0
    %1968 = vmatpush2.msra.mxu0 0.0
    %1969 = vmatprep.subr.mxu0 0.0
    %1970 = vmatpush2.msra.mxu0 0.0
    %1971 = vmatprep.subr.mxu0 0.0
    %1972 = vmatpush2.msra.mxu0 0.0
    %1973 = vmatprep.subr.mxu0 0.0
    %1974 = vmatpush2.msra.mxu0 0.0
    %1975 = vmatprep.subr.mxu0 0.0
    %1976 = vmatpush2.msra.mxu0 0.0
    %1977 = vmatprep.subr.mxu0 0.0
    %1978 = vmatpush2.msra.mxu0 0.0
    %1979 = vmatprep.subr.mxu0 0.0
    %1980 = vmatpush2.msra.mxu0 0.0
    %1981 = vmatprep.subr.mxu0 0.0
    %1982 = vmatpush2.msra.mxu0 0.0
    %1983 = vmatprep.subr.mxu0 0.0
    %1984 = vmatpush2.msra.mxu0 0.0
    %1985 = vmatprep.subr.mxu0 0.0
    %1986 = vmatpush2.msra.mxu0 0.0
    %1987 = vmatprep.subr.mxu0 0.0
    %1988 = vmatpush2.msra.mxu0 0.0
    %1989 = vmatprep.subr.mxu0 0.0
    %1990 = vmatpush2.msra.mxu0 0.0
    %1991 = vmatprep.subr.mxu0 0.0
    %1992 = vmatpush2.msra.mxu0 0.0
    %1993 = vmatprep.subr.mxu0 0.0
    %1994 = vmatpush2.msra.mxu0 0.0
    %1995 = vmatprep.subr.mxu0 0.0
    %1996 = vmatpush2.msra.mxu0 0.0
    %1997 = vmatprep.mubr.f32.mxu0 0.0
    %1998 = vmatmul.mubr.f32.gmra.mxu0 %v638
    %v1999 = vpop.f32.mrf.mxu0
    %v2000 = vadd.f32 0.0, %v1999
    %v2001 = vpop.f32.mrf.mxu0
    %2002 = vmatprep.mubr.f32.mxu0 0.0
    %2003 = vmatmul.mubr.f32.gmra.mxu0 %v641
    %v2004 = vpop.f32.mrf.mxu0
    %v2005 = vadd.f32 0.0, %v2004
    %v2006 = vpop.f32.mrf.mxu0
    %2007 = vmatprep.mubr.f32.mxu0 0.0
    %2008 = vmatmul.mubr.f32.gmra.mxu0 %v644
    %v2009 = vpop.f32.mrf.mxu0
    %v2010 = vadd.f32 0.0, %v2009
    %v2011 = vpop.f32.mrf.mxu0
    %2012 = vmatprep.mubr.f32.mxu0 0.0
    %2013 = vmatmul.mubr.f32.gmra.mxu0 %v647
    %v2014 = vpop.f32.mrf.mxu0
    %v2015 = vadd.f32 0.0, %v2014
    %v2016 = vpop.f32.mrf.mxu0
    %2017 = vmatprep.mubr.f32.mxu0 0.0
    %2018 = vmatmul.mubr.f32.gmra.mxu0 %v650
    %v2019 = vpop.f32.mrf.mxu0
    %v2020 = vadd.f32 0.0, %v2019
    %v2021 = vpop.f32.mrf.mxu0
    %2022 = vmatprep.mubr.f32.mxu0 0.0
    %2023 = vmatmul.mubr.f32.gmra.mxu0 %v653
    %v2024 = vpop.f32.mrf.mxu0
    %v2025 = vadd.f32 0.0, %v2024
    %v2026 = vpop.f32.mrf.mxu0
    %2027 = vmatprep.mubr.f32.mxu0 0.0
    %2028 = vmatmul.mubr.f32.gmra.mxu0 %v656
    %v2029 = vpop.f32.mrf.mxu0
    %v2030 = vadd.f32 0.0, %v2029
    %v2031 = vpop.f32.mrf.mxu0
    %2032 = vmatprep.mubr.f32.mxu0 0.0
    %2033 = vmatmul.mubr.f32.gmra.mxu0 %v659
    %v2034 = vpop.f32.mrf.mxu0
    %v2035 = vadd.f32 0.0, %v2034
    %v2036 = vpop.f32.mrf.mxu0
    %2037 = vdwg.mxu0
    %2038 = vset.pattern.permute.xlu0 8
    %2039 = vperm.xlu0 %2038, %v625
    %v2040 = vpop.permute.xlu0 %2039
    %2042 = vset.pattern.permute.xlu0 8
    %2043 = vperm.xlu0 %2042, %v626
    %v2044 = vpop.permute.xlu0 %2043
    %2046 = vset.pattern.permute.xlu0 8
    %2047 = vperm.xlu0 %2046, %v627
    %v2048 = vpop.permute.xlu0 %2047
    %2050 = vset.pattern.permute.xlu0 8
    %2051 = vperm.xlu0 %2050, %v628
    %v2052 = vpop.permute.xlu0 %2051
    %2054 = vset.pattern.permute.xlu0 8
    %2055 = vperm.xlu0 %2054, %v629
    %v2056 = vpop.permute.xlu0 %2055
    %2058 = vset.pattern.permute.xlu0 8
    %2059 = vperm.xlu0 %2058, %v630
    %v2060 = vpop.permute.xlu0 %2059
    %2062 = vset.pattern.permute.xlu0 8
    %2063 = vperm.xlu0 %2062, %v631
    %v2064 = vpop.permute.xlu0 %2063
    %2066 = vset.pattern.permute.xlu0 8
    %2067 = vperm.xlu0 %2066, %v632
    %v2068 = vpop.permute.xlu0 %2067
    %v2070 = vmul.f32 %v2040, %v2000
    %v2071 = vmul.f32 %v2044, %v2005
    %v2072 = vmul.f32 %v2048, %v2010
    %v2073 = vmul.f32 %v2052, %v2015
    %v2074 = vmul.f32 %v2056, %v2020
    %v2075 = vmul.f32 %v2060, %v2025
    %v2076 = vmul.f32 %v2064, %v2030
    %v2077 = vmul.f32 %v2068, %v2035
    %v2078 = vadd.f32 %v1920, %v2070
    %v2079 = vadd.f32 %v1921, %v2071
    %v2080 = vadd.f32 %v1922, %v2072
    %v2081 = vadd.f32 %v1923, %v2073
    %v2082 = vadd.f32 %v1924, %v2074
    %v2083 = vadd.f32 %v1925, %v2075
    %v2084 = vadd.f32 %v1926, %v2076
    %v2085 = vadd.f32 %v1927, %v2077
    %v2086 = vadd.f32 %v2078, %v2079
    %v2087 = vadd.f32 %v2086, %v2080
    %v2088 = vadd.f32 %v2087, %v2081
    %v2089 = vadd.f32 %v2088, %v2082
    %v2090 = vadd.f32 %v2089, %v2083
    %v2091 = vadd.f32 %v2090, %v2084
    %v2092 = vadd.f32 %v2091, %v2085
    %v2093 = vrot.slane %v2092, 4
    %v2094 = vadd.f32 %v2092, %v2093
    %v2095 = vrot.slane %v2094, 2
    %v2096 = vadd.f32 %v2094, %v2095
    %v2097 = vrot.slane %v2096, 1
    %v2098 = vadd.f32 %v2096, %v2097
    %2099 = vst [vmem:[%s17] sm:$0x1] %v2098
    %v2100 = vld [vmem:[%s3] sm:$0xf]
    %vm2101 = vcmask 1043456
    %v2102 = vsel %vm2101, %v2100, -inf
    %v2103 = vrot.slane %v2102, 4
    %v2104 = vmax.f32 %v2102, %v2103
    %v2105 = vrot.slane %v2104, 2
    %v2106 = vmax.f32 %v2104, %v2105
    %v2107 = vrot.slane %v2106, 1
    %v2108 = vmax.f32 %v2106, %v2107
    %v2109 = vsub.f32 %v2098, %v2108
    %v2110 = vand.u32 2147483647, %v2109
    %vm2111 = vcmp.lt.f32.partialorder %v2110, 1.0
    %v2112 = vmul.f32 %v2109, 0.5
    %v2113 = vmul.f32 %v2112, %v2109
    %v2114 = vsub.f32 %v2110, 0.5
    %v2115 = vsel %vm2111, %v2113, %v2114
    %vm2116 = vcmp.ge.f32.partialorder %v2108, 0.0
    %v2117 = vsub.f32 0.0, %v443
    %v2118 = vsel %vm462, %v2117, 0.0
    %vm2119 = vcmask 1040384
    %v2120 = vsel %vm2119, %v2118, 0.0
    %2121 = vadd.xlane.f32.xlu0 %v2120
    %v2122 = vpop.xlane.xlu0 %2121
    %v2123 = vrot.slane %v2122, 4
    %v2124 = vadd.f32 %v2122, %v2123
    %v2125 = vrot.slane %v2124, 2
    %v2126 = vadd.f32 %v2124, %v2125
    %v2127 = vrot.slane %v2126, 1
    %v2128 = vadd.f32 %v2126, %v2127
    %s2129 = vtos %v2128
    %s2130 = scalar_lea.smem [#allocation2], 0
    %2131 = sst [smem:[%s2130]] %s2129
    %v2132 = vsel %vm462, 1, 0
    %v2133 = vcvt.s32.f32 %v2132
    %v2134 = vsel %vm2119, %v2133, 0.0
    %2135 = vadd.xlane.f32.xlu0 %v2134
    %v2136 = vpop.xlane.xlu0 %2135
    %v2137 = vrot.slane %v2136, 4
    %v2138 = vadd.f32 %v2136, %v2137
    %v2139 = vrot.slane %v2138, 2
    %v2140 = vadd.f32 %v2138, %v2139
    %v2141 = vrot.slane %v2140, 1
    %v2142 = vadd.f32 %v2140, %v2141
    %s2143 = vtos %v2142
    %s2144 = scalar_lea.smem [#allocation2], 1
    %2145 = sst [smem:[%s2144]] %s2143
    %vm2146 = vcmp.eq.s32.totalorder %v460, %v429
    %vm2147 = vmand %vm462, %vm2146
    %v2148 = vsel %vm2147, 1.0, 0.0
    %v2149 = vsel %vm2119, %v2148, 0.0
    %2150 = vadd.xlane.f32.xlu0 %v2149
    %v2151 = vpop.xlane.xlu0 %2150
    %v2152 = vrot.slane %v2151, 4
    %v2153 = vadd.f32 %v2151, %v2152
    %v2154 = vrot.slane %v2153, 2
    %v2155 = vadd.f32 %v2153, %v2154
    %v2156 = vrot.slane %v2155, 1
    %v2157 = vadd.f32 %v2155, %v2156
    %s2158 = vtos %v2157
    %s2159 = scalar_lea.smem [#allocation2], 2
    %2160 = sst [smem:[%s2159]] %s2158
    %v2161 = vsel %vm2116, %v2115, 0.0
    %v2162 = vsel %vm2119, %v2161, 0.0
    %2163 = vadd.xlane.f32.xlu0 %v2162
    %v2164 = vpop.xlane.xlu0 %2163
    %v2165 = vrot.slane %v2164, 4
    %v2166 = vadd.f32 %v2164, %v2165
    %v2167 = vrot.slane %v2166, 2
    %v2168 = vadd.f32 %v2166, %v2167
    %v2169 = vrot.slane %v2168, 1
    %v2170 = vadd.f32 %v2168, %v2169
    %s2171 = vtos %v2170
    %s2172 = scalar_lea.smem [#allocation2], 3
    %2173 = sst [smem:[%s2172]] %s2171
    %v2174 = vsel %vm2116, %v2110, 0.0
    %v2175 = vsel %vm2119, %v2174, 0.0
    %2176 = vadd.xlane.f32.xlu0 %v2175
    %v2177 = vpop.xlane.xlu0 %2176
    %v2178 = vrot.slane %v2177, 4
    %v2179 = vadd.f32 %v2177, %v2178
    %v2180 = vrot.slane %v2179, 2
    %v2181 = vadd.f32 %v2179, %v2180
    %v2182 = vrot.slane %v2181, 1
    %v2183 = vadd.f32 %v2181, %v2182
    %s2184 = vtos %v2183
    %s2185 = scalar_lea.smem [#allocation2], 4
    %2186 = sst [smem:[%s2185]] %s2184
    %v2187 = vsel %vm2116, 1, 0
    %v2188 = vcvt.s32.f32 %v2187
    %v2189 = vsel %vm2119, %v2188, 0.0
    %2190 = vadd.xlane.f32.xlu0 %v2189
    %v2191 = vpop.xlane.xlu0 %2190
    %v2192 = vrot.slane %v2191, 4
    %v2193 = vadd.f32 %v2191, %v2192
    %v2194 = vrot.slane %v2193, 2
    %v2195 = vadd.f32 %v2193, %v2194
    %v2196 = vrot.slane %v2195, 1
    %v2197 = vadd.f32 %v2195, %v2196
    %s2198 = vtos %v2197
    %s2199 = scalar_lea.smem [#allocation2], 5
    %2200 = sst [smem:[%s2199]] %s2198
    // Predicated region
    $region62: #{generalized_segdisp_forward.1} parent=1 // pred_check
      _
    $region63: #{generalized_segdisp_forward.1} parent=1 // pred_check_branch
      %2202 = sbr.rel (0) target = $region65
    $region64: #{generalized_segdisp_forward.1} parent=1 // pred_region
      _
    $region65: #{generalized_segdisp_forward.1} parent=1 // pred_fallthru
      _
    // Predicated region
    $region66: #{generalized_segdisp_forward.1} parent=1 // pred_check
      _
    $region67: #{generalized_segdisp_forward.1} parent=1 // pred_check_branch
      %2204 = sbr.rel (0) target = $region69
    $region68: #{generalized_segdisp_forward.1} parent=1 // pred_region
      _
    $region69: #{generalized_segdisp_forward.1} parent=1 // pred_fallthru
      _
    // Predicated region
    $region70: #{generalized_segdisp_forward.1} parent=1 // pred_check
      _
    $region71: #{generalized_segdisp_forward.1} parent=1 // pred_check_branch
      %2206 = sbr.rel (0) target = $region73
    $region72: #{generalized_segdisp_forward.1} parent=1 // pred_region
      _
    $region73: #{generalized_segdisp_forward.1} parent=1 // pred_fallthru
      _
    // Predicated region
    $region74: #{generalized_segdisp_forward.1} parent=1 // pred_check
      _
    $region75: #{generalized_segdisp_forward.1} parent=1 // pred_check_branch
      %2208 = sbr.rel (0) target = $region77
    $region76: #{generalized_segdisp_forward.1} parent=1 // pred_region
      %s2210 = ssub.s32 16, 16
      %2211 = vsyncadd [#allocation3], %s2210
      %s2213 = sshll.u32 %s18, 4
      %s2214 = int_to_ptr.vmem [resolvable:$true] %s2213
      %2216 = dma.smem_to_vmem [#allocation2], 16, %s2214, [#allocation3]
    $region77: #{generalized_segdisp_forward.1} parent=1 // pred_fallthru
      _
    // Predicated region
    $region78: #{generalized_segdisp_forward.1} parent=1 // pred_check
      _
    $region79: #{generalized_segdisp_forward.1} parent=1 // pred_check_branch
      %2218 = sbr.rel (0) target = $region81
    $region80: #{generalized_segdisp_forward.1} parent=1 // pred_region
      _
    $region81: #{generalized_segdisp_forward.1} parent=1 // pred_fallthru
      _
    // Predicated region
    $region82: #{generalized_segdisp_forward.1} parent=1 // pred_check
      _
    $region83: #{generalized_segdisp_forward.1} parent=1 // pred_check_branch
      %2220 = sbr.rel (0) target = $region85
    $region84: #{generalized_segdisp_forward.1} parent=1 // pred_region
      _
    $region85: #{generalized_segdisp_forward.1} parent=1 // pred_fallthru
      _
    // Predicated region
    $region86: #{generalized_segdisp_forward.1} parent=1 // pred_check
      _
    $region87: #{generalized_segdisp_forward.1} parent=1 // pred_check_branch
      %2222 = sbr.rel (0) target = $region89
    $region88: #{generalized_segdisp_forward.1} parent=1 // pred_region
      _
    $region89: #{generalized_segdisp_forward.1} parent=1 // pred_fallthru
      _
    // Predicated region
    $region90: #{generalized_segdisp_forward.1} parent=1 // pred_check
      _
    $region91: #{generalized_segdisp_forward.1} parent=1 // pred_check_branch
      %2224 = sbr.rel (0) target = $region93
    $region92: #{generalized_segdisp_forward.1} parent=1 // pred_region
      %2225 = dma.done [#allocation3], 16
    $region93: #{generalized_segdisp_forward.1} parent=1 // pred_fallthru
      _
    %2226 = sfence
    %2227 = vsyncpa [#allocation3], 1

</llo_original>
